<compile_context>
chip_gen: v7x
topology: tpu7x:2x2x1
jax: 0.10.0
libtpu: 0.0.40
codegen_flags: <defaults>
</compile_context>

<pallas_src>
import functools

import numpy as np
import jax
import jax.numpy as jnp
from jax.experimental import pallas as pl
from jax.experimental.pallas import tpu as pltpu


def dfi_kernel(x_ref, taps_ref, bn_ref, w1_ref, b1_ref, w2_ref, b2_ref, o_ref,
               *, H, W, C):
    BH, WC = x_ref.shape                 # (B*H, W*C)
    x = x_ref[...]                       # f32

    # ---- depthwise 3x3 conv (padding=1, groups=C) via rolls + masks ----
    # (dwconv bias omitted: training-mode BN removes any per-channel constant)
    h_idx = jax.lax.broadcasted_iota(jnp.int32, (BH, 1), 0) % H   # image-row index
    acc = jnp.zeros((BH, WC), jnp.float32)
    for oy in (-1, 0, 1):
        if oy == 0:
            rows = x
        else:
            rows = jnp.roll(x, -oy, axis=0)                  # rows[r] = x[r + oy]
            valid = (h_idx + oy >= 0) & (h_idx + oy < H)     # H boundary (also kills
            rows = jnp.where(valid, rows, 0.0)               # cross-batch wrap)
        for ox in (-1, 0, 1):
            src = rows if ox == 0 else jnp.roll(rows, -ox * C, axis=1)
            k = (oy + 1) * 3 + (ox + 1)
            # W-boundary (padding) mask is baked into the tap vectors.
            acc = acc + src * taps_ref[k:k + 1, :]

    # ---- BatchNorm2d training-mode stats: single pass (sum + sum of squares) ----
    n_inv = 1.0 / (BH * W)                                   # 1 / (B*H*W)
    colsum = jnp.sum(acc, axis=0, keepdims=True)             # (1, W*C)
    colsq = jnp.sum(acc * acc, axis=0, keepdims=True)        # (1, W*C)
    csum = colsum[:, 0:C]
    csq = colsq[:, 0:C]
    for w in range(1, W):                                    # fold the W replicas
        csum = csum + colsum[:, w * C:(w + 1) * C]
        csq = csq + colsq[:, w * C:(w + 1) * C]
    mean = csum * n_inv                                      # (1, C)
    var = jnp.maximum(csq * n_inv - mean * mean, 0.0)        # biased variance
    scale = bn_ref[0:1, :] * jax.lax.rsqrt(var + 1e-5)       # gamma * rsqrt(var+eps)
    shift = bn_ref[1:2, :] - mean * scale                    # beta - mean*scale
    scale_wc = jnp.concatenate([scale] * W, axis=1)          # (1, W*C)
    shift_wc = jnp.concatenate([shift] * W, axis=1)          # (1, W*C)

    # ---- (interaction ∘ pwconv1) -> ReLU -> pwconv2 : block-diag bf16 MXU matmuls ----
    w1 = w1_ref[...]                                         # (W*C, W*Chid) bf16
    # BN shift folded into the pwconv1 bias with a tiny (1, W*C)x(W*C, W*Chid) matmul.
    bias1 = jnp.dot(shift_wc.astype(jnp.bfloat16), w1,
                    preferred_element_type=jnp.float32) + b1_ref[...]
    z = (acc * scale_wc).astype(jnp.bfloat16)                # BN scale only
    t = jnp.dot(z, w1, preferred_element_type=jnp.float32) + bias1
    t = jnp.maximum(t, 0.0).astype(jnp.bfloat16)
    t = jnp.dot(t, w2_ref[...], preferred_element_type=jnp.float32) + b2_ref[...]

    # ---- residual add; (B*H, W*Co) store is lane-dense (multiple of 128) ----
    o_ref[...] = x + t


def make_params(in_channels, out_channels, kernel_size=3, expansion=2):
    """Deterministic synthetic parameters (PyTorch-layout shapes)."""
    C, Co = in_channels, out_channels
    Chid = Co * expansion
    ks = jax.random.split(jax.random.PRNGKey(42), 8)
    p = dict(
        dw_w=0.1 * jax.random.normal(ks[0], (kernel_size, kernel_size, C), jnp.float32),
        dw_b=0.01 * jax.random.normal(ks[1], (C,), jnp.float32),
        gamma=jnp.ones((C,), jnp.float32),          # BatchNorm2d default init
        beta=jnp.zeros((C,), jnp.float32),
        int_w=0.1 * jax.random.normal(ks[2], (C // 4, C // 4), jnp.float32),   # (out, in)
        int_b=0.01 * jax.random.normal(ks[3], (C // 4,), jnp.float32),
        w1=0.1 * jax.random.normal(ks[4], (Chid, C), jnp.float32),             # (out, in)
        b1=0.01 * jax.random.normal(ks[5], (Chid,), jnp.float32),
        w2=0.1 * jax.random.normal(ks[6], (Co, Chid), jnp.float32),            # (out, in)
        b2=0.01 * jax.random.normal(ks[7], (Co,), jnp.float32),
    )
    return p


def _fold_params(p, W):
    """Host-side parameter algebra: tap tiling + interaction fold + kron packing."""
    dw = np.asarray(p["dw_w"], np.float32)          # (KH, KW, C)
    KH, KW, C = dw.shape
    assert (KH, KW) == (3, 3), "kernel assumes a 3x3 depthwise conv"
    cs = C // 8

    # 3x3 taps tiled over W with the W-boundary (padding) masks baked in: (9, W*C).
    wpos = np.arange(W)
    taps = np.zeros((KH * KW, W * C), np.float32)
    for dy in range(KH):
        for dx in range(KW):
            ox = dx - KW // 2
            valid = ((wpos + ox) >= 0) & ((wpos + ox) < W)                # (W,)
            taps[dy * KW + dx] = (valid[:, None] * dw[dy, dx][None, :]).reshape(-1)

    # Interaction 1x1 conv on chunks {0,6} + channel reorder == linear routing M.
    iw = np.asarray(p["int_w"], np.float32)          # (C//4, C//4), (out, in)
    ib = np.asarray(p["int_b"], np.float32)
    M = np.zeros((C, C), np.float32)
    M[0:cs, 0:2 * cs] = iw[:, 0:cs].T                # chunk 0 -> interaction inputs
    M[6 * cs:7 * cs, 0:2 * cs] = iw[:, cs:2 * cs].T  # chunk 6 -> interaction inputs
    for j in range(2 * cs, 7 * cs):                  # chunks 1..5 pass through
        M[j - cs, j] = 1.0
    for j in range(7 * cs, 8 * cs):                  # chunk 7 passes through
        M[j, j] = 1.0
    zbias = np.zeros((C,), np.float32)
    zbias[0:2 * cs] = ib

    W1 = np.asarray(p["w1"], np.float32).T           # (C, Chid)
    W2 = np.asarray(p["w2"], np.float32).T           # (Chid, Co)
    W1f = M @ W1                                     # interaction folded into pwconv1
    b1f = np.asarray(p["b1"], np.float32) + zbias @ W1

    # Block-diagonal kron(I_W, .) so the GEMMs run lane-dense on (B*H, W*C) rows.
    eyeW = np.eye(W, dtype=np.float32)
    w1_big = np.kron(eyeW, W1f)                      # (W*C, W*Chid)
    w2_big = np.kron(eyeW, W2)                       # (W*Chid, W*Co)
    b1_big = np.tile(b1f, W)[None, :]                # (1, W*Chid)
    b2_big = np.tile(np.asarray(p["b2"], np.float32), W)[None, :]   # (1, W*Co)

    bn = np.stack([np.asarray(p["gamma"], np.float32),
                   np.asarray(p["beta"], np.float32)], axis=0)      # (2, C)

    return (jnp.asarray(taps), jnp.asarray(bn),
            jnp.asarray(w1_big, dtype=jnp.bfloat16), jnp.asarray(b1_big),
            jnp.asarray(w2_big, dtype=jnp.bfloat16), jnp.asarray(b2_big))


def dfi_block_pallas(x_nchw, p):
    B, C, H, W = x_nchw.shape
    Co = p["w2"].shape[0]
    assert Co == C, "residual add requires out_channels == in_channels"
    assert C % 8 == 0, "num_splits=8 and the C//4 interaction conv require C % 8 == 0"

    taps, bn, w1_big, b1_big, w2_big, b2_big = _fold_params(p, W)
    x2 = jnp.transpose(x_nchw, (0, 2, 3, 1)).reshape(B * H, W * C)   # lane-dense rows

    kernel = functools.partial(dfi_kernel, H=H, W=W, C=C)
    # TODO(synk): for large shapes / v7x dual-TensorCore, tile over (B, H) with a
    # grid + two-pass BN (per-tile sum/sum-sq accumulation, then normalize) so the
    # footprint fits 64 MiB VMEM and both cores are used; at this size one block
    # fits comfortably and a grid would only add per-step overhead.
    out = pl.pallas_call(
        kernel,
        out_shape=jax.ShapeDtypeStruct((B * H, W * Co), jnp.float32),
        in_specs=[pl.BlockSpec(memory_space=pltpu.MemorySpace.VMEM)] * 7,
        out_specs=pl.BlockSpec(memory_space=pltpu.MemorySpace.VMEM),
        compiler_params=pltpu.CompilerParams(vmem_limit_bytes=32 * 1024 * 1024),
    )(x2, taps, bn, w1_big, b1_big, w2_big, b2_big)
    return jnp.transpose(out.reshape(B, H, W, Co), (0, 3, 1, 2))     # -> NCHW


def dfi_block_ref(x_nchw, p, eps=1e-5):
    """Pure-JAX reference (same math, no Pallas) for a correctness check."""
    B, C, H, W = x_nchw.shape
    x = jnp.transpose(x_nchw, (0, 2, 3, 1))
    w = p["dw_w"].reshape(p["dw_w"].shape[0], p["dw_w"].shape[1], 1, C)   # HWIO
    h = jax.lax.conv_general_dilated(
        x, w, window_strides=(1, 1), padding="SAME",
        dimension_numbers=("NHWC", "HWIO", "NHWC"),
        feature_group_count=C) + p["dw_b"]
    mean = jnp.mean(h, axis=(0, 1, 2))
    var = jnp.mean((h - mean) ** 2, axis=(0, 1, 2))
    hn = (h - mean) * jax.lax.rsqrt(var + eps) * p["gamma"] + p["beta"]
    cs = C // 8
    y = jnp.concatenate([hn[..., 0:cs], hn[..., 6 * cs:7 * cs]], axis=-1)
    y = jnp.einsum("bhwc,oc->bhwo", y, p["int_w"]) + p["int_b"]
    z = jnp.concatenate([y, hn[..., cs:6 * cs], hn[..., 7 * cs:]], axis=-1)
    t = jnp.einsum("bhwc,oc->bhwo", z, p["w1"]) + p["b1"]
    t = jnp.maximum(t, 0.0)
    t = jnp.einsum("bhwc,oc->bhwo", t, p["w2"]) + p["b2"]
    return jnp.transpose(x + t, (0, 3, 1, 2))


if __name__ == "__main__":
    # Residual add requires out_channels == in_channels; num_splits=8 and the
    # C//4 interaction conv require C % 8 == 0.
    B, C, H, W = 2, 16, 16, 16
    x = jax.random.normal(jax.random.PRNGKey(0), (B, C, H, W), jnp.float32)
    params = make_params(in_channels=C, out_channels=C)

    out = jax.block_until_ready(dfi_block_pallas(x, params))
    ref = jax.block_until_ready(dfi_block_ref(x, params))

    assert out.shape == (B, C, H, W), out.shape
    max_err = float(jnp.max(jnp.abs(out - ref)))
    # Tolerance sized for bf16 MXU inputs with f32 accumulation (conv/BN are f32).
    assert max_err < 3e-2, f"mismatch vs reference: {max_err}"
    print("KERNEL_OK")
</pallas_src>

<mosaic_0001>
module attributes {stable_mosaic.version = 11 : i64} {
  func.func @dfi_kernel(%arg0: memref<32x256xf32, #tpu.memory_space<vmem>>, %arg1: memref<9x256xf32, #tpu.memory_space<vmem>>, %arg2: memref<2x16xf32, #tpu.memory_space<vmem>>, %arg3: memref<256x512xbf16, #tpu.memory_space<vmem>>, %arg4: memref<1x512xf32, #tpu.memory_space<vmem>>, %arg5: memref<512x256xbf16, #tpu.memory_space<vmem>>, %arg6: memref<1x256xf32, #tpu.memory_space<vmem>>, %arg7: memref<32x256xf32, #tpu.memory_space<vmem>>) attributes {dimension_semantics = [], scalar_prefetch = 0 : i64, scratch_operands = 0 : i64, tpu.core_type = #tpu.core_type<tc>} {
    %c0 = arith.constant 0 : index
    %c0_0 = arith.constant 0 : index
    %0 = vector.load %arg0[%c0, %c0_0] : memref<32x256xf32, #tpu.memory_space<vmem>>, vector<32x256xf32>
    %1 = tpu.iota {dimensions = array<i32: 0>} : vector<32x1xi32>
    %c16_i32 = arith.constant 16 : i32
    %c0_i32 = arith.constant 0 : i32
    %2 = arith.cmpi eq, %c16_i32, %c0_i32 : i32
    %c1_i32 = arith.constant 1 : i32
    %3 = arith.select %2, %c1_i32, %c16_i32 : i32
    %4 = vector.broadcast %3 : i32 to vector<32x1xi32>
    %5 = arith.remsi %1, %4 : vector<32x1xi32>
    %c0_i32_1 = arith.constant 0 : i32
    %6 = vector.broadcast %c0_i32_1 : i32 to vector<32x1xi32>
    %7 = arith.cmpi ne, %5, %6 : vector<32x1xi32>
    %c0_i32_2 = arith.constant 0 : i32
    %8 = vector.broadcast %c0_i32_2 : i32 to vector<32x1xi32>
    %9 = arith.cmpi slt, %5, %8 : vector<32x1xi32>
    %c0_i32_3 = arith.constant 0 : i32
    %10 = arith.cmpi slt, %3, %c0_i32_3 : i32
    %11 = vector.broadcast %10 : i1 to vector<32x1xi1>
    %12 = vector.broadcast %11 : vector<32x1xi1> to vector<32x1xi1>
    %13 = arith.xori %9, %12 : vector<32x1xi1>
    %14 = arith.andi %13, %7 : vector<32x1xi1>
    %15 = vector.broadcast %3 : i32 to vector<32x1xi32>
    %16 = arith.addi %5, %15 : vector<32x1xi32>
    %17 = arith.select %14, %16, %5 : vector<32x1xi1>, vector<32x1xi32>
    %cst = arith.constant 0.000000e+00 : f32
    %18 = vector.broadcast %cst : f32 to vector<32x256xf32>
    %19 = vector.extract_strided_slice %0 {offsets = [31, 0], sizes = [1, 256], strides = [1, 1]} : vector<32x256xf32> to vector<1x256xf32>
    %20 = vector.extract_strided_slice %0 {offsets = [0, 0], sizes = [31, 256], strides = [1, 1]} : vector<32x256xf32> to vector<31x256xf32>
    %21 = tpu.concatenate %19, %20 in 0 : vector<1x256xf32>, vector<31x256xf32> -> vector<32x256xf32>
    %c-1_i32 = arith.constant -1 : i32
    %22 = vector.broadcast %c-1_i32 : i32 to vector<32x1xi32>
    %23 = arith.addi %17, %22 : vector<32x1xi32>
    %c0_i32_4 = arith.constant 0 : i32
    %24 = vector.broadcast %c0_i32_4 : i32 to vector<32x1xi32>
    %25 = arith.cmpi sge, %23, %24 : vector<32x1xi32>
    %c-1_i32_5 = arith.constant -1 : i32
    %26 = vector.broadcast %c-1_i32_5 : i32 to vector<32x1xi32>
    %27 = arith.addi %17, %26 : vector<32x1xi32>
    %c16_i32_6 = arith.constant 16 : i32
    %28 = vector.broadcast %c16_i32_6 : i32 to vector<32x1xi32>
    %29 = arith.cmpi slt, %27, %28 : vector<32x1xi32>
    %30 = arith.andi %25, %29 : vector<32x1xi1>
    %cst_7 = arith.constant 0.000000e+00 : f32
    %31 = vector.shape_cast %30 : vector<32x1xi1> to vector<32x1xi1>
    %32 = vector.broadcast %31 : vector<32x1xi1> to vector<32x256xi1>
    %33 = vector.broadcast %cst_7 : f32 to vector<32x256xf32>
    %34 = arith.select %32, %21, %33 : vector<32x256xi1>, vector<32x256xf32>
    %35 = vector.extract_strided_slice %34 {offsets = [0, 240], sizes = [32, 16], strides = [1, 1]} : vector<32x256xf32> to vector<32x16xf32>
    %36 = vector.extract_strided_slice %34 {offsets = [0, 0], sizes = [32, 240], strides = [1, 1]} : vector<32x256xf32> to vector<32x240xf32>
    %37 = tpu.concatenate %35, %36 in 1 : vector<32x16xf32>, vector<32x240xf32> -> vector<32x256xf32>
    %c0_8 = arith.constant 0 : index
    %c0_9 = arith.constant 0 : index
    %38 = vector.load %arg1[%c0_8, %c0_9] : memref<9x256xf32, #tpu.memory_space<vmem>>, vector<1x256xf32>
    %39 = vector.broadcast %38 : vector<1x256xf32> to vector<32x256xf32>
    %40 = arith.mulf %37, %39 : vector<32x256xf32>
    %41 = arith.addf %18, %40 : vector<32x256xf32>
    %c1 = arith.constant 1 : index
    %c0_10 = arith.constant 0 : index
    %42 = vector.load %arg1[%c1, %c0_10] : memref<9x256xf32, #tpu.memory_space<vmem>>, vector<1x256xf32>
    %43 = vector.broadcast %42 : vector<1x256xf32> to vector<32x256xf32>
    %44 = arith.mulf %34, %43 : vector<32x256xf32>
    %45 = arith.addf %41, %44 : vector<32x256xf32>
    %46 = vector.extract_strided_slice %34 {offsets = [0, 16], sizes = [32, 240], strides = [1, 1]} : vector<32x256xf32> to vector<32x240xf32>
    %47 = vector.extract_strided_slice %34 {offsets = [0, 0], sizes = [32, 16], strides = [1, 1]} : vector<32x256xf32> to vector<32x16xf32>
    %48 = tpu.concatenate %46, %47 in 1 : vector<32x240xf32>, vector<32x16xf32> -> vector<32x256xf32>
    %c2 = arith.constant 2 : index
    %c0_11 = arith.constant 0 : index
    %49 = vector.load %arg1[%c2, %c0_11] : memref<9x256xf32, #tpu.memory_space<vmem>>, vector<1x256xf32>
    %50 = vector.broadcast %49 : vector<1x256xf32> to vector<32x256xf32>
    %51 = arith.mulf %48, %50 : vector<32x256xf32>
    %52 = arith.addf %45, %51 : vector<32x256xf32>
    %53 = vector.extract_strided_slice %0 {offsets = [0, 240], sizes = [32, 16], strides = [1, 1]} : vector<32x256xf32> to vector<32x16xf32>
    %54 = vector.extract_strided_slice %0 {offsets = [0, 0], sizes = [32, 240], strides = [1, 1]} : vector<32x256xf32> to vector<32x240xf32>
    %55 = tpu.concatenate %53, %54 in 1 : vector<32x16xf32>, vector<32x240xf32> -> vector<32x256xf32>
    %c3 = arith.constant 3 : index
    %c0_12 = arith.constant 0 : index
    %56 = vector.load %arg1[%c3, %c0_12] : memref<9x256xf32, #tpu.memory_space<vmem>>, vector<1x256xf32>
    %57 = vector.broadcast %56 : vector<1x256xf32> to vector<32x256xf32>
    %58 = arith.mulf %55, %57 : vector<32x256xf32>
    %59 = arith.addf %52, %58 : vector<32x256xf32>
    %c4 = arith.constant 4 : index
    %c0_13 = arith.constant 0 : index
    %60 = vector.load %arg1[%c4, %c0_13] : memref<9x256xf32, #tpu.memory_space<vmem>>, vector<1x256xf32>
    %61 = vector.broadcast %60 : vector<1x256xf32> to vector<32x256xf32>
    %62 = arith.mulf %0, %61 : vector<32x256xf32>
    %63 = arith.addf %59, %62 : vector<32x256xf32>
    %64 = vector.extract_strided_slice %0 {offsets = [0, 16], sizes = [32, 240], strides = [1, 1]} : vector<32x256xf32> to vector<32x240xf32>
    %65 = vector.extract_strided_slice %0 {offsets = [0, 0], sizes = [32, 16], strides = [1, 1]} : vector<32x256xf32> to vector<32x16xf32>
    %66 = tpu.concatenate %64, %65 in 1 : vector<32x240xf32>, vector<32x16xf32> -> vector<32x256xf32>
    %c5 = arith.constant 5 : index
    %c0_14 = arith.constant 0 : index
    %67 = vector.load %arg1[%c5, %c0_14] : memref<9x256xf32, #tpu.memory_space<vmem>>, vector<1x256xf32>
    %68 = vector.broadcast %67 : vector<1x256xf32> to vector<32x256xf32>
    %69 = arith.mulf %66, %68 : vector<32x256xf32>
    %70 = arith.addf %63, %69 : vector<32x256xf32>
    %71 = vector.extract_strided_slice %0 {offsets = [1, 0], sizes = [31, 256], strides = [1, 1]} : vector<32x256xf32> to vector<31x256xf32>
    %72 = vector.extract_strided_slice %0 {offsets = [0, 0], sizes = [1, 256], strides = [1, 1]} : vector<32x256xf32> to vector<1x256xf32>
    %73 = tpu.concatenate %71, %72 in 0 : vector<31x256xf32>, vector<1x256xf32> -> vector<32x256xf32>
    %c1_i32_15 = arith.constant 1 : i32
    %74 = vector.broadcast %c1_i32_15 : i32 to vector<32x1xi32>
    %75 = arith.addi %17, %74 : vector<32x1xi32>
    %c0_i32_16 = arith.constant 0 : i32
    %76 = vector.broadcast %c0_i32_16 : i32 to vector<32x1xi32>
    %77 = arith.cmpi sge, %75, %76 : vector<32x1xi32>
    %c1_i32_17 = arith.constant 1 : i32
    %78 = vector.broadcast %c1_i32_17 : i32 to vector<32x1xi32>
    %79 = arith.addi %17, %78 : vector<32x1xi32>
    %c16_i32_18 = arith.constant 16 : i32
    %80 = vector.broadcast %c16_i32_18 : i32 to vector<32x1xi32>
    %81 = arith.cmpi slt, %79, %80 : vector<32x1xi32>
    %82 = arith.andi %77, %81 : vector<32x1xi1>
    %cst_19 = arith.constant 0.000000e+00 : f32
    %83 = vector.shape_cast %82 : vector<32x1xi1> to vector<32x1xi1>
    %84 = vector.broadcast %83 : vector<32x1xi1> to vector<32x256xi1>
    %85 = vector.broadcast %cst_19 : f32 to vector<32x256xf32>
    %86 = arith.select %84, %73, %85 : vector<32x256xi1>, vector<32x256xf32>
    %87 = vector.extract_strided_slice %86 {offsets = [0, 240], sizes = [32, 16], strides = [1, 1]} : vector<32x256xf32> to vector<32x16xf32>
    %88 = vector.extract_strided_slice %86 {offsets = [0, 0], sizes = [32, 240], strides = [1, 1]} : vector<32x256xf32> to vector<32x240xf32>
    %89 = tpu.concatenate %87, %88 in 1 : vector<32x16xf32>, vector<32x240xf32> -> vector<32x256xf32>
    %c6 = arith.constant 6 : index
    %c0_20 = arith.constant 0 : index
    %90 = vector.load %arg1[%c6, %c0_20] : memref<9x256xf32, #tpu.memory_space<vmem>>, vector<1x256xf32>
    %91 = vector.broadcast %90 : vector<1x256xf32> to vector<32x256xf32>
    %92 = arith.mulf %89, %91 : vector<32x256xf32>
    %93 = arith.addf %70, %92 : vector<32x256xf32>
    %c7 = arith.constant 7 : index
    %c0_21 = arith.constant 0 : index
    %94 = vector.load %arg1[%c7, %c0_21] : memref<9x256xf32, #tpu.memory_space<vmem>>, vector<1x256xf32>
    %95 = vector.broadcast %94 : vector<1x256xf32> to vector<32x256xf32>
    %96 = arith.mulf %86, %95 : vector<32x256xf32>
    %97 = arith.addf %93, %96 : vector<32x256xf32>
    %98 = vector.extract_strided_slice %86 {offsets = [0, 16], sizes = [32, 240], strides = [1, 1]} : vector<32x256xf32> to vector<32x240xf32>
    %99 = vector.extract_strided_slice %86 {offsets = [0, 0], sizes = [32, 16], strides = [1, 1]} : vector<32x256xf32> to vector<32x16xf32>
    %100 = tpu.concatenate %98, %99 in 1 : vector<32x240xf32>, vector<32x16xf32> -> vector<32x256xf32>
    %c8 = arith.constant 8 : index
    %c0_22 = arith.constant 0 : index
    %101 = vector.load %arg1[%c8, %c0_22] : memref<9x256xf32, #tpu.memory_space<vmem>>, vector<1x256xf32>
    %102 = vector.broadcast %101 : vector<1x256xf32> to vector<32x256xf32>
    %103 = arith.mulf %100, %102 : vector<32x256xf32>
    %104 = arith.addf %97, %103 : vector<32x256xf32>
    %cst_23 = arith.constant dense<0.000000e+00> : vector<256xf32>
    %105 = vector.multi_reduction <add>, %104, %cst_23 [0] : vector<32x256xf32> to vector<256xf32>
    %106 = vector.shape_cast %105 : vector<256xf32> to vector<1x256xf32>
    %107 = arith.mulf %104, %104 : vector<32x256xf32>
    %cst_24 = arith.constant dense<0.000000e+00> : vector<256xf32>
    %108 = vector.multi_reduction <add>, %107, %cst_24 [0] : vector<32x256xf32> to vector<256xf32>
    %109 = vector.shape_cast %108 : vector<256xf32> to vector<1x256xf32>
    %110 = vector.extract_strided_slice %106 {offsets = [0, 0], sizes = [1, 16], strides = [1, 1]} : vector<1x256xf32> to vector<1x16xf32>
    %111 = vector.extract_strided_slice %109 {offsets = [0, 0], sizes = [1, 16], strides = [1, 1]} : vector<1x256xf32> to vector<1x16xf32>
    %112 = vector.extract_strided_slice %106 {offsets = [0, 16], sizes = [1, 16], strides = [1, 1]} : vector<1x256xf32> to vector<1x16xf32>
    %113 = arith.addf %110, %112 : vector<1x16xf32>
    %114 = vector.extract_strided_slice %109 {offsets = [0, 16], sizes = [1, 16], strides = [1, 1]} : vector<1x256xf32> to vector<1x16xf32>
    %115 = arith.addf %111, %114 : vector<1x16xf32>
    %116 = vector.extract_strided_slice %106 {offsets = [0, 32], sizes = [1, 16], strides = [1, 1]} : vector<1x256xf32> to vector<1x16xf32>
    %117 = arith.addf %113, %116 : vector<1x16xf32>
    %118 = vector.extract_strided_slice %109 {offsets = [0, 32], sizes = [1, 16], strides = [1, 1]} : vector<1x256xf32> to vector<1x16xf32>
    %119 = arith.addf %115, %118 : vector<1x16xf32>
    %120 = vector.extract_strided_slice %106 {offsets = [0, 48], sizes = [1, 16], strides = [1, 1]} : vector<1x256xf32> to vector<1x16xf32>
    %121 = arith.addf %117, %120 : vector<1x16xf32>
    %122 = vector.extract_strided_slice %109 {offsets = [0, 48], sizes = [1, 16], strides = [1, 1]} : vector<1x256xf32> to vector<1x16xf32>
    %123 = arith.addf %119, %122 : vector<1x16xf32>
    %124 = vector.extract_strided_slice %106 {offsets = [0, 64], sizes = [1, 16], strides = [1, 1]} : vector<1x256xf32> to vector<1x16xf32>
    %125 = arith.addf %121, %124 : vector<1x16xf32>
    %126 = vector.extract_strided_slice %109 {offsets = [0, 64], sizes = [1, 16], strides = [1, 1]} : vector<1x256xf32> to vector<1x16xf32>
    %127 = arith.addf %123, %126 : vector<1x16xf32>
    %128 = vector.extract_strided_slice %106 {offsets = [0, 80], sizes = [1, 16], strides = [1, 1]} : vector<1x256xf32> to vector<1x16xf32>
    %129 = arith.addf %125, %128 : vector<1x16xf32>
    %130 = vector.extract_strided_slice %109 {offsets = [0, 80], sizes = [1, 16], strides = [1, 1]} : vector<1x256xf32> to vector<1x16xf32>
    %131 = arith.addf %127, %130 : vector<1x16xf32>
    %132 = vector.extract_strided_slice %106 {offsets = [0, 96], sizes = [1, 16], strides = [1, 1]} : vector<1x256xf32> to vector<1x16xf32>
    %133 = arith.addf %129, %132 : vector<1x16xf32>
    %134 = vector.extract_strided_slice %109 {offsets = [0, 96], sizes = [1, 16], strides = [1, 1]} : vector<1x256xf32> to vector<1x16xf32>
    %135 = arith.addf %131, %134 : vector<1x16xf32>
    %136 = vector.extract_strided_slice %106 {offsets = [0, 112], sizes = [1, 16], strides = [1, 1]} : vector<1x256xf32> to vector<1x16xf32>
    %137 = arith.addf %133, %136 : vector<1x16xf32>
    %138 = vector.extract_strided_slice %109 {offsets = [0, 112], sizes = [1, 16], strides = [1, 1]} : vector<1x256xf32> to vector<1x16xf32>
    %139 = arith.addf %135, %138 : vector<1x16xf32>
    %140 = vector.extract_strided_slice %106 {offsets = [0, 128], sizes = [1, 16], strides = [1, 1]} : vector<1x256xf32> to vector<1x16xf32>
    %141 = arith.addf %137, %140 : vector<1x16xf32>
    %142 = vector.extract_strided_slice %109 {offsets = [0, 128], sizes = [1, 16], strides = [1, 1]} : vector<1x256xf32> to vector<1x16xf32>
    %143 = arith.addf %139, %142 : vector<1x16xf32>
    %144 = vector.extract_strided_slice %106 {offsets = [0, 144], sizes = [1, 16], strides = [1, 1]} : vector<1x256xf32> to vector<1x16xf32>
    %145 = arith.addf %141, %144 : vector<1x16xf32>
    %146 = vector.extract_strided_slice %109 {offsets = [0, 144], sizes = [1, 16], strides = [1, 1]} : vector<1x256xf32> to vector<1x16xf32>
    %147 = arith.addf %143, %146 : vector<1x16xf32>
    %148 = vector.extract_strided_slice %106 {offsets = [0, 160], sizes = [1, 16], strides = [1, 1]} : vector<1x256xf32> to vector<1x16xf32>
    %149 = arith.addf %145, %148 : vector<1x16xf32>
    %150 = vector.extract_strided_slice %109 {offsets = [0, 160], sizes = [1, 16], strides = [1, 1]} : vector<1x256xf32> to vector<1x16xf32>
    %151 = arith.addf %147, %150 : vector<1x16xf32>
    %152 = vector.extract_strided_slice %106 {offsets = [0, 176], sizes = [1, 16], strides = [1, 1]} : vector<1x256xf32> to vector<1x16xf32>
    %153 = arith.addf %149, %152 : vector<1x16xf32>
    %154 = vector.extract_strided_slice %109 {offsets = [0, 176], sizes = [1, 16], strides = [1, 1]} : vector<1x256xf32> to vector<1x16xf32>
    %155 = arith.addf %151, %154 : vector<1x16xf32>
    %156 = vector.extract_strided_slice %106 {offsets = [0, 192], sizes = [1, 16], strides = [1, 1]} : vector<1x256xf32> to vector<1x16xf32>
    %157 = arith.addf %153, %156 : vector<1x16xf32>
    %158 = vector.extract_strided_slice %109 {offsets = [0, 192], sizes = [1, 16], strides = [1, 1]} : vector<1x256xf32> to vector<1x16xf32>
    %159 = arith.addf %155, %158 : vector<1x16xf32>
    %160 = vector.extract_strided_slice %106 {offsets = [0, 208], sizes = [1, 16], strides = [1, 1]} : vector<1x256xf32> to vector<1x16xf32>
    %161 = arith.addf %157, %160 : vector<1x16xf32>
    %162 = vector.extract_strided_slice %109 {offsets = [0, 208], sizes = [1, 16], strides = [1, 1]} : vector<1x256xf32> to vector<1x16xf32>
    %163 = arith.addf %159, %162 : vector<1x16xf32>
    %164 = vector.extract_strided_slice %106 {offsets = [0, 224], sizes = [1, 16], strides = [1, 1]} : vector<1x256xf32> to vector<1x16xf32>
    %165 = arith.addf %161, %164 : vector<1x16xf32>
    %166 = vector.extract_strided_slice %109 {offsets = [0, 224], sizes = [1, 16], strides = [1, 1]} : vector<1x256xf32> to vector<1x16xf32>
    %167 = arith.addf %163, %166 : vector<1x16xf32>
    %168 = vector.extract_strided_slice %106 {offsets = [0, 240], sizes = [1, 16], strides = [1, 1]} : vector<1x256xf32> to vector<1x16xf32>
    %169 = arith.addf %165, %168 : vector<1x16xf32>
    %170 = vector.extract_strided_slice %109 {offsets = [0, 240], sizes = [1, 16], strides = [1, 1]} : vector<1x256xf32> to vector<1x16xf32>
    %171 = arith.addf %167, %170 : vector<1x16xf32>
    %cst_25 = arith.constant 0.001953125 : f32
    %172 = vector.broadcast %cst_25 : f32 to vector<1x16xf32>
    %173 = arith.mulf %169, %172 : vector<1x16xf32>
    %cst_26 = arith.constant 0.001953125 : f32
    %174 = vector.broadcast %cst_26 : f32 to vector<1x16xf32>
    %175 = arith.mulf %171, %174 : vector<1x16xf32>
    %176 = arith.mulf %173, %173 : vector<1x16xf32>
    %177 = arith.subf %175, %176 : vector<1x16xf32>
    %cst_27 = arith.constant 0.000000e+00 : f32
    %178 = vector.broadcast %cst_27 : f32 to vector<1x16xf32>
    %179 = arith.maximumf %177, %178 : vector<1x16xf32>
    %c0_28 = arith.constant 0 : index
    %c0_29 = arith.constant 0 : index
    %180 = vector.load %arg2[%c0_28, %c0_29] : memref<2x16xf32, #tpu.memory_space<vmem>>, vector<1x16xf32>
    %cst_30 = arith.constant 9.99999974E-6 : f32
    %181 = vector.broadcast %cst_30 : f32 to vector<1x16xf32>
    %182 = arith.addf %179, %181 : vector<1x16xf32>
    %183 = math.rsqrt %182 : vector<1x16xf32>
    %184 = arith.mulf %180, %183 : vector<1x16xf32>
    %c1_31 = arith.constant 1 : index
    %c0_32 = arith.constant 0 : index
    %185 = vector.load %arg2[%c1_31, %c0_32] : memref<2x16xf32, #tpu.memory_space<vmem>>, vector<1x16xf32>
    %186 = arith.mulf %173, %184 : vector<1x16xf32>
    %187 = arith.subf %185, %186 : vector<1x16xf32>
    %188 = tpu.concatenate %184, %184, %184, %184, %184, %184, %184, %184, %184, %184, %184, %184, %184, %184, %184, %184 in 1 : vector<1x16xf32>, vector<1x16xf32>, vector<1x16xf32>, vector<1x16xf32>, vector<1x16xf32>, vector<1x16xf32>, vector<1x16xf32>, vector<1x16xf32>, vector<1x16xf32>, vector<1x16xf32>, vector<1x16xf32>, vector<1x16xf32>, vector<1x16xf32>, vector<1x16xf32>, vector<1x16xf32>, vector<1x16xf32> -> vector<1x256xf32>
    %189 = tpu.concatenate %187, %187, %187, %187, %187, %187, %187, %187, %187, %187, %187, %187, %187, %187, %187, %187 in 1 : vector<1x16xf32>, vector<1x16xf32>, vector<1x16xf32>, vector<1x16xf32>, vector<1x16xf32>, vector<1x16xf32>, vector<1x16xf32>, vector<1x16xf32>, vector<1x16xf32>, vector<1x16xf32>, vector<1x16xf32>, vector<1x16xf32>, vector<1x16xf32>, vector<1x16xf32>, vector<1x16xf32>, vector<1x16xf32> -> vector<1x256xf32>
    %c0_33 = arith.constant 0 : index
    %c0_34 = arith.constant 0 : index
    %190 = vector.load %arg3[%c0_33, %c0_34] : memref<256x512xbf16, #tpu.memory_space<vmem>>, vector<256x512xbf16>
    %191 = arith.truncf %189 : vector<1x256xf32> to vector<1x256xbf16>
    %cst_35 = arith.constant dense<0.000000e+00> : vector<1x512xf32>
    %192 = tpu.matmul %191, %190, %cst_35 {dimension_numbers = #tpu.dot_dimension_numbers<[1], [0], [0], [1], [0, 0, 1, 1], [], []>} : vector<1x256xbf16>, vector<256x512xbf16>, vector<1x512xf32> -> vector<1x512xf32>
    %c0_36 = arith.constant 0 : index
    %c0_37 = arith.constant 0 : index
    %193 = vector.load %arg4[%c0_36, %c0_37] : memref<1x512xf32, #tpu.memory_space<vmem>>, vector<1x512xf32>
    %194 = arith.addf %192, %193 : vector<1x512xf32>
    %195 = vector.broadcast %188 : vector<1x256xf32> to vector<32x256xf32>
    %196 = arith.mulf %104, %195 : vector<32x256xf32>
    %197 = arith.truncf %196 : vector<32x256xf32> to vector<32x256xbf16>
    %cst_38 = arith.constant dense<0.000000e+00> : vector<32x512xf32>
    %198 = tpu.matmul %197, %190, %cst_38 {dimension_numbers = #tpu.dot_dimension_numbers<[1], [0], [0], [1], [0, 0, 1, 1], [], []>} : vector<32x256xbf16>, vector<256x512xbf16>, vector<32x512xf32> -> vector<32x512xf32>
    %199 = vector.broadcast %194 : vector<1x512xf32> to vector<32x512xf32>
    %200 = arith.addf %198, %199 : vector<32x512xf32>
    %cst_39 = arith.constant 0.000000e+00 : f32
    %201 = vector.broadcast %cst_39 : f32 to vector<32x512xf32>
    %202 = arith.maximumf %200, %201 : vector<32x512xf32>
    %203 = arith.truncf %202 : vector<32x512xf32> to vector<32x512xbf16>
    %c0_40 = arith.constant 0 : index
    %c0_41 = arith.constant 0 : index
    %204 = vector.load %arg5[%c0_40, %c0_41] : memref<512x256xbf16, #tpu.memory_space<vmem>>, vector<512x256xbf16>
    %cst_42 = arith.constant dense<0.000000e+00> : vector<32x256xf32>
    %205 = tpu.matmul %203, %204, %cst_42 {dimension_numbers = #tpu.dot_dimension_numbers<[1], [0], [0], [1], [0, 0, 1, 1], [], []>} : vector<32x512xbf16>, vector<512x256xbf16>, vector<32x256xf32> -> vector<32x256xf32>
    %c0_43 = arith.constant 0 : index
    %c0_44 = arith.constant 0 : index
    %206 = vector.load %arg6[%c0_43, %c0_44] : memref<1x256xf32, #tpu.memory_space<vmem>>, vector<1x256xf32>
    %207 = vector.broadcast %206 : vector<1x256xf32> to vector<32x256xf32>
    %208 = arith.addf %205, %207 : vector<32x256xf32>
    %209 = arith.addf %0, %208 : vector<32x256xf32>
    %c0_45 = arith.constant 0 : index
    %c0_46 = arith.constant 0 : index
    %210 = vector.load %arg7[%c0_45, %c0_46] : memref<32x256xf32, #tpu.memory_space<vmem>>, vector<32x256xf32>
    tpu.vector_store %arg7[%c0_45, %c0_46], %209 {strides = array<i32>} : memref<32x256xf32, #tpu.memory_space<vmem>>, vector<32x256xf32>,
    return
  }
}

</mosaic_0001>

<llo_original>
// kernel: tpu_custom_call.1
$region0: #{tpu_custom_call.1}
  #allocation0 [shape = 'u32[]', space=smem, size = 0x4, offset = 0x4, fixed_abs, tag = 'smem constant byte address 0x4 - core index']
  #allocation1 [shape = 'u32[144,128]{1,0:T(1,128)}', space=vmem, size = 0x12000, scoped, tag = 'internal scratch']
  %s0 = inlined_call_operand.hbm [shape: f32[32,256], index: 0, kind: input, shape index: {}]
  %s1 = inlined_call_operand.hbm [shape: f32[9,256], index: 1, kind: input, shape index: {}]
  %s2 = inlined_call_operand.vmem [shape: f32[2,16], index: 2, kind: input, shape index: {}]
  %s3 = inlined_call_operand.hbm [shape: bf16[256,512], index: 3, kind: input, shape index: {}]
  %s4 = inlined_call_operand.vmem [shape: f32[1,512], index: 4, kind: input, shape index: {}]
  %s5 = inlined_call_operand.hbm [shape: bf16[512,256], index: 5, kind: input, shape index: {}]
  %s6 = inlined_call_operand.vmem [shape: f32[1,256], index: 6, kind: input, shape index: {}]
  %s7 = inlined_call_operand.hbm [shape: f32[32,256], index: 7, kind: output, shape index: {}]
  %s8 = sld [smem:[#allocation0]]
  $region54: #{tpu_custom_call.1} parent=0
    _
  %s10 = ssub.s32 1, %s8
  %s11 = scalar_select 0, %s10, %s8
  $region1: #{tpu_custom_call.1} parent=0
    #allocation2 [shape = 'u8[32768]{0}', space=vmem, size = 0x8000, scoped, tag = 'input window, operand 0, single buffered']
    #allocation3 [shape = 's32[1]{0}', space=sflag, size = 0x4, scoped, tag = 'scoped memory for tpu_custom_call.1']
    #allocation4 [shape = 's32[1]{0}', space=sflag, size = 0x4, scoped, tag = 'scoped memory for tpu_custom_call.1']
    #allocation5 [shape = 'u8[16384]{0}', space=vmem, size = 0x4000, scoped, tag = 'input window, operand 1, single buffered']
    #allocation6 [shape = 's32[1]{0}', space=sflag, size = 0x4, scoped, tag = 'scoped memory for tpu_custom_call.1']
    #allocation7 [shape = 'u8[262144]{0}', space=vmem, size = 0x40000, scoped, tag = 'input window, operand 3, single buffered']
    #allocation8 [shape = 'u8[262144]{0}', space=vmem, size = 0x40000, scoped, tag = 'input window, operand 5, single buffered']
    #allocation9 [shape = 's32[1]{0}', space=sflag, size = 0x4, scoped, tag = 'scoped memory for tpu_custom_call.1']
    #allocation10 [shape = 'u8[32768]{0}', space=vmem, size = 0x8000, scoped, tag = 'output window, operand 0, single buffered']
    %12 = vsyncpa [#allocation3], 0
    %13 = vsyncpa [#allocation6], 0
    %14 = vsyncpa [#allocation9], 0
    %15 = vsyncpa [#allocation4], 0
    // Predicated region
    $region2: #{tpu_custom_call.1} parent=1 // pred_check
      _
    $region3: #{tpu_custom_call.1} parent=1 // pred_check_branch
      %17 = sbr.rel (0) target = $region5
    $region4: #{tpu_custom_call.1} parent=1 // pred_region
      %s19 = ssub.s32 1024, 1024
      %20 = vsyncadd [#allocation3], %s19
      %s21 = sshll.u32 [#allocation2], 4
      %s22 = int_to_ptr.vmem [resolvable:$true] %s21
      %27 = dma.hbm_to_vmem [thread:$0]  %s0, 1024, %s22, [#allocation3], 256, 256, 16
    $region5: #{tpu_custom_call.1} parent=1 // pred_fallthru
      _
    // Predicated region
    $region6: #{tpu_custom_call.1} parent=1 // pred_check
      _
    $region7: #{tpu_custom_call.1} parent=1 // pred_check_branch
      %29 = sbr.rel (0) target = $region9
    $region8: #{tpu_custom_call.1} parent=1 // pred_region
      %s31 = ssub.s32 512, 512
      %32 = vsyncadd [#allocation6], %s31
      %s33 = sshll.u32 [#allocation5], 4
      %s34 = int_to_ptr.vmem [resolvable:$true] %s33
      %39 = dma.hbm_to_vmem [thread:$0]  %s1, 512, %s34, [#allocation6], 256, 256, 16
    $region9: #{tpu_custom_call.1} parent=1 // pred_fallthru
      _
    // Predicated region
    $region10: #{tpu_custom_call.1} parent=1 // pred_check
      _
    $region11: #{tpu_custom_call.1} parent=1 // pred_check_branch
      %41 = sbr.rel (0) target = $region13
    $region12: #{tpu_custom_call.1} parent=1 // pred_region
      _
    $region13: #{tpu_custom_call.1} parent=1 // pred_fallthru
      _
    // Predicated region
    $region14: #{tpu_custom_call.1} parent=1 // pred_check
      _
    $region15: #{tpu_custom_call.1} parent=1 // pred_check_branch
      %43 = sbr.rel (0) target = $region17
    $region16: #{tpu_custom_call.1} parent=1 // pred_region
      %s45 = ssub.s32 8192, 8192
      %46 = vsyncadd [#allocation6], %s45
      %s47 = sshll.u32 [#allocation7], 4
      %s48 = int_to_ptr.vmem [resolvable:$true] %s47
      %53 = dma.hbm_to_vmem [thread:$0]  %s3, 8192, %s48, [#allocation6], 256, 256, 16
    $region17: #{tpu_custom_call.1} parent=1 // pred_fallthru
      _
    // Predicated region
    $region18: #{tpu_custom_call.1} parent=1 // pred_check
      _
    $region19: #{tpu_custom_call.1} parent=1 // pred_check_branch
      %55 = sbr.rel (0) target = $region21
    $region20: #{tpu_custom_call.1} parent=1 // pred_region
      _
    $region21: #{tpu_custom_call.1} parent=1 // pred_fallthru
      _
    // Predicated region
    $region22: #{tpu_custom_call.1} parent=1 // pred_check
      _
    $region23: #{tpu_custom_call.1} parent=1 // pred_check_branch
      %57 = sbr.rel (0) target = $region25
    $region24: #{tpu_custom_call.1} parent=1 // pred_region
      %s59 = ssub.s32 8192, 8192
      %60 = vsyncadd [#allocation9], %s59
      %s61 = sshll.u32 [#allocation8], 4
      %s62 = int_to_ptr.vmem [resolvable:$true] %s61
      %67 = dma.hbm_to_vmem [thread:$0]  %s5, 8192, %s62, [#allocation9], 128, 128, 8
    $region25: #{tpu_custom_call.1} parent=1 // pred_fallthru
      _
    // Predicated region
    $region26: #{tpu_custom_call.1} parent=1 // pred_check
      _
    $region27: #{tpu_custom_call.1} parent=1 // pred_check_branch
      %69 = sbr.rel (0) target = $region29
    $region28: #{tpu_custom_call.1} parent=1 // pred_region
      _
    $region29: #{tpu_custom_call.1} parent=1 // pred_fallthru
      _
    // Predicated region
    $region30: #{tpu_custom_call.1} parent=1 // pred_check
      _
    $region31: #{tpu_custom_call.1} parent=1 // pred_check_branch
      %71 = sbr.rel (0) target = $region33
    $region32: #{tpu_custom_call.1} parent=1 // pred_region
      %72 = dma.done [#allocation3], 1024
    $region33: #{tpu_custom_call.1} parent=1 // pred_fallthru
      _
    // Predicated region
    $region34: #{tpu_custom_call.1} parent=1 // pred_check
      _
    $region35: #{tpu_custom_call.1} parent=1 // pred_check_branch
      %74 = sbr.rel (0) target = $region37
    $region36: #{tpu_custom_call.1} parent=1 // pred_region
      %75 = dma.done [#allocation6], 512
    $region37: #{tpu_custom_call.1} parent=1 // pred_fallthru
      _
    // Predicated region
    $region38: #{tpu_custom_call.1} parent=1 // pred_check
      _
    $region39: #{tpu_custom_call.1} parent=1 // pred_check_branch
      %77 = sbr.rel (0) target = $region41
    $region40: #{tpu_custom_call.1} parent=1 // pred_region
      %78 = dma.done [#allocation6], 8192
    $region41: #{tpu_custom_call.1} parent=1 // pred_fallthru
      _
    // Predicated region
    $region42: #{tpu_custom_call.1} parent=1 // pred_check
      _
    $region43: #{tpu_custom_call.1} parent=1 // pred_check_branch
      %80 = sbr.rel (0) target = $region45
    $region44: #{tpu_custom_call.1} parent=1 // pred_region
      %81 = dma.done [#allocation9], 8192
    $region45: #{tpu_custom_call.1} parent=1 // pred_fallthru
      _
    %v82 = vld [vmem:[#allocation2] sm:$0xff]
    %v83 = vld [vmem:[#allocation2 + $0x8] sm:$0xff]
    %v84 = vld [vmem:[#allocation2 + $0x10] sm:$0xff]
    %v85 = vld [vmem:[#allocation2 + $0x18] sm:$0xff]
    %v86 = vld [vmem:[#allocation2 + $0x20] sm:$0xff]
    %v87 = vld [vmem:[#allocation2 + $0x28] sm:$0xff]
    %v88 = vld [vmem:[#allocation2 + $0x30] sm:$0xff]
    %v89 = vld [vmem:[#allocation2 + $0x38] sm:$0xff]
    %v90 = vlaneseq
    %v91 = vshrl.u32 %v90, 7
    %v92 = vadd.s32 %v91, 8
    %v93 = vadd.s32 %v91, 16
    %v94 = vadd.s32 %v91, 24
    %vm95 = vcmp.lt.s32.totalorder %v91, 0
    %v96 = vsub.s32 0, %v91
    %v97 = vsel %vm95, %v96, %v91
    %v98 = vshrl.u32 %v97, 4
    %v99 = vand.u32 %v97, 15
    %v100 = vsub.s32 0, %v99
    %v101 = vsel %vm95, %v100, %v99
    %vm102 = vcmp.lt.s32.totalorder %v92, 0
    %v103 = vsub.s32 0, %v92
    %v104 = vsel %vm102, %v103, %v92
    %v105 = vshrl.u32 %v104, 4
    %v106 = vand.u32 %v104, 15
    %v107 = vsub.s32 0, %v106
    %v108 = vsel %vm102, %v107, %v106
    %vm109 = vcmp.lt.s32.totalorder %v93, 0
    %v110 = vsub.s32 0, %v93
    %v111 = vsel %vm109, %v110, %v93
    %v112 = vshrl.u32 %v111, 4
    %v113 = vand.u32 %v111, 15
    %v114 = vsub.s32 0, %v113
    %v115 = vsel %vm109, %v114, %v113
    %vm116 = vcmp.lt.s32.totalorder %v94, 0
    %v117 = vsub.s32 0, %v94
    %v118 = vsel %vm116, %v117, %v94
    %v119 = vshrl.u32 %v118, 4
    %v120 = vand.u32 %v118, 15
    %v121 = vsub.s32 0, %v120
    %v122 = vsel %vm116, %v121, %v120
    %vm123 = vcmp.ne.s32.totalorder %v101, 0
    %vm124 = vcmp.ne.s32.totalorder %v108, 0
    %vm125 = vcmp.ne.s32.totalorder %v115, 0
    %vm126 = vcmp.ne.s32.totalorder %v122, 0
    %vm127 = vcmp.lt.s32.totalorder %v101, 0
    %vm128 = vcmp.lt.s32.totalorder %v108, 0
    %vm129 = vcmp.lt.s32.totalorder %v115, 0
    %vm130 = vcmp.lt.s32.totalorder %v122, 0
    %vm131 = vmand %vm127, %vm123
    %vm132 = vmand %vm128, %vm124
    %vm133 = vmand %vm129, %vm125
    %vm134 = vmand %vm130, %vm126
    %v135 = vadd.s32 %v101, 16
    %v136 = vadd.s32 %v108, 16
    %v137 = vadd.s32 %v115, 16
    %v138 = vadd.s32 %v122, 16
    %v139 = vsel %vm131, %v135, %v101
    %v140 = vsel %vm132, %v136, %v108
    %v141 = vsel %vm133, %v137, %v115
    %v142 = vsel %vm134, %v138, %v122
    %v145 = vrot.slane %v88, 7
    %v146 = vrot.slane %v89, 7
    %vm155 = vcmask 1040384
    %v156 = vrot.slane %v82, 7
    %v157 = vrot.slane %v83, 7
    %v158 = vrot.slane %v84, 7
    %v159 = vsel %vm155, %v156, %v158
    %v160 = vrot.slane %v85, 7
    %v161 = vsel %vm155, %v157, %v160
    %v162 = vrot.slane %v86, 7
    %v163 = vsel %vm155, %v158, %v162
    %v164 = vrot.slane %v87, 7
    %v165 = vsel %vm155, %v160, %v164
    %v166 = vsel %vm155, %v162, %v145
    %v167 = vsel %vm155, %v164, %v146
    %v176 = vsel %vm155, %v145, %v156
    %v177 = vsel %vm155, %v146, %v157
    %v178 = vadd.s32 %v139, 4294967295
    %v179 = vadd.s32 %v140, 4294967295
    %v180 = vadd.s32 %v141, 4294967295
    %v181 = vadd.s32 %v142, 4294967295
    %vm182 = vcmp.ge.s32.totalorder %v178, 0
    %vm183 = vcmp.ge.s32.totalorder %v179, 0
    %vm184 = vcmp.ge.s32.totalorder %v180, 0
    %vm185 = vcmp.ge.s32.totalorder %v181, 0
    %vm186 = vcmp.lt.s32.totalorder %v178, 16
    %vm187 = vcmp.lt.s32.totalorder %v179, 16
    %vm188 = vcmp.lt.s32.totalorder %v180, 16
    %vm189 = vcmp.lt.s32.totalorder %v181, 16
    %vm190 = vmand %vm182, %vm186
    %vm191 = vmand %vm183, %vm187
    %vm192 = vmand %vm184, %vm188
    %vm193 = vmand %vm185, %vm189
    %v194 = vsel %vm190, 1, 0
    %v195 = vsel %vm191, 1, 0
    %v196 = vsel %vm192, 1, 0
    %v197 = vsel %vm193, 1, 0
    %vm198 = vcmp.eq.s32.totalorder %v194, 1
    %vm199 = vcmp.eq.s32.totalorder %v195, 1
    %vm200 = vcmp.eq.s32.totalorder %v196, 1
    %vm201 = vcmp.eq.s32.totalorder %v197, 1
    %v202 = vsel %vm198, %v176, 0.0
    %v203 = vsel %vm198, %v177, 0.0
    %v204 = vsel %vm199, %v159, 0.0
    %v205 = vsel %vm199, %v161, 0.0
    %v206 = vsel %vm200, %v163, 0.0
    %v207 = vsel %vm200, %v165, 0.0
    %v208 = vsel %vm201, %v166, 0.0
    %v209 = vsel %vm201, %v167, 0.0
    %214 = vrot.lane.b32.xlu0 %v203, 16
    %v215 = vpop.permute.xlu0 %214
    %216 = vrot.lane.b32.xlu0 %v205, 16
    %v217 = vpop.permute.xlu0 %216
    %218 = vrot.lane.b32.xlu0 %v207, 16
    %v219 = vpop.permute.xlu0 %218
    %220 = vrot.lane.b32.xlu0 %v209, 16
    %v221 = vpop.permute.xlu0 %220
    %230 = vrot.lane.b32.xlu0 %v202, 16
    %v231 = vpop.permute.xlu0 %230
    %232 = vrot.lane.b32.xlu0 %v204, 16
    %v233 = vpop.permute.xlu0 %232
    %234 = vrot.lane.b32.xlu0 %v206, 16
    %v235 = vpop.permute.xlu0 %234
    %236 = vrot.lane.b32.xlu0 %v208, 16
    %v237 = vpop.permute.xlu0 %236
    %vm238 = vcmask 130048
    %v239 = vsel %vm238, %v231, %v215
    %v240 = vsel %vm238, %v233, %v217
    %v241 = vsel %vm238, %v235, %v219
    %v242 = vsel %vm238, %v237, %v221
    %v251 = vsel %vm238, %v215, %v231
    %v252 = vsel %vm238, %v217, %v233
    %v253 = vsel %vm238, %v219, %v235
    %v254 = vsel %vm238, %v221, %v237
    %v255 = vld [vmem:[#allocation5] ss:$8 sm:$0x3]
    %v257 = vlaneseq
    %v258 = vshrl.u32 %v257, 7
    %v259 = vsub.s32 0, %v258
    %v260 = vrot.slane %v255, %v259
    %v261 = vlaneseq
    %v262 = vshrl.u32 %v261, 7
    %v263 = vsub.s32 1, %v262
    %v264 = vrot.slane %v255, %v263
    %v267 = vmul.f32 %v251, %v260
    %v268 = vmul.f32 %v239, %v264
    %v269 = vmul.f32 %v252, %v260
    %v270 = vmul.f32 %v240, %v264
    %v271 = vmul.f32 %v253, %v260
    %v272 = vmul.f32 %v241, %v264
    %v273 = vmul.f32 %v254, %v260
    %v274 = vmul.f32 %v242, %v264
    %v275 = vadd.f32 %v267, 0.0
    %v276 = vadd.f32 %v268, 0.0
    %v277 = vadd.f32 %v269, 0.0
    %v278 = vadd.f32 %v270, 0.0
    %v279 = vadd.f32 %v271, 0.0
    %v280 = vadd.f32 %v272, 0.0
    %v281 = vadd.f32 %v273, 0.0
    %v282 = vadd.f32 %v274, 0.0
    %s283 = scalar_lea.vmem [#allocation5], 1
    %v284 = vld [vmem:[%s283] ss:$8 sm:$0x3]
    %v286 = vlaneseq
    %v287 = vshrl.u32 %v286, 7
    %v288 = vsub.s32 0, %v287
    %v289 = vrot.slane %v284, %v288
    %v290 = vlaneseq
    %v291 = vshrl.u32 %v290, 7
    %v292 = vsub.s32 1, %v291
    %v293 = vrot.slane %v284, %v292
    %v296 = vmul.f32 %v202, %v289
    %v297 = vmul.f32 %v203, %v293
    %v298 = vmul.f32 %v204, %v289
    %v299 = vmul.f32 %v205, %v293
    %v300 = vmul.f32 %v206, %v289
    %v301 = vmul.f32 %v207, %v293
    %v302 = vmul.f32 %v208, %v289
    %v303 = vmul.f32 %v209, %v293
    %v304 = vadd.f32 %v275, %v296
    %v305 = vadd.f32 %v276, %v297
    %v306 = vadd.f32 %v277, %v298
    %v307 = vadd.f32 %v278, %v299
    %v308 = vadd.f32 %v279, %v300
    %v309 = vadd.f32 %v280, %v301
    %v310 = vadd.f32 %v281, %v302
    %v311 = vadd.f32 %v282, %v303
    %312 = vrot.lane.b32.xlu0 %v202, 112
    %v313 = vpop.permute.xlu0 %312
    %314 = vrot.lane.b32.xlu0 %v203, 112
    %v315 = vpop.permute.xlu0 %314
    %316 = vrot.lane.b32.xlu0 %v204, 112
    %v317 = vpop.permute.xlu0 %316
    %318 = vrot.lane.b32.xlu0 %v205, 112
    %v319 = vpop.permute.xlu0 %318
    %320 = vrot.lane.b32.xlu0 %v206, 112
    %v321 = vpop.permute.xlu0 %320
    %322 = vrot.lane.b32.xlu0 %v207, 112
    %v323 = vpop.permute.xlu0 %322
    %324 = vrot.lane.b32.xlu0 %v208, 112
    %v325 = vpop.permute.xlu0 %324
    %326 = vrot.lane.b32.xlu0 %v209, 112
    %v327 = vpop.permute.xlu0 %326
    %vm328 = vcmask 916480
    %v329 = vsel %vm328, %v313, %v315
    %v330 = vsel %vm328, %v317, %v319
    %v331 = vsel %vm328, %v321, %v323
    %v332 = vsel %vm328, %v325, %v327
    %v345 = vsel %vm328, %v315, %v313
    %v346 = vsel %vm328, %v319, %v317
    %v347 = vsel %vm328, %v323, %v321
    %v348 = vsel %vm328, %v327, %v325
    %s349 = scalar_lea.vmem [#allocation5], 2
    %v350 = vld [vmem:[%s349] ss:$8 sm:$0x3]
    %v352 = vlaneseq
    %v353 = vshrl.u32 %v352, 7
    %v354 = vsub.s32 0, %v353
    %v355 = vrot.slane %v350, %v354
    %v356 = vlaneseq
    %v357 = vshrl.u32 %v356, 7
    %v358 = vsub.s32 1, %v357
    %v359 = vrot.slane %v350, %v358
    %v362 = vmul.f32 %v329, %v355
    %v363 = vmul.f32 %v345, %v359
    %v364 = vmul.f32 %v330, %v355
    %v365 = vmul.f32 %v346, %v359
    %v366 = vmul.f32 %v331, %v355
    %v367 = vmul.f32 %v347, %v359
    %v368 = vmul.f32 %v332, %v355
    %v369 = vmul.f32 %v348, %v359
    %v370 = vadd.f32 %v304, %v362
    %v371 = vadd.f32 %v305, %v363
    %v372 = vadd.f32 %v306, %v364
    %v373 = vadd.f32 %v307, %v365
    %v374 = vadd.f32 %v308, %v366
    %v375 = vadd.f32 %v309, %v367
    %v376 = vadd.f32 %v310, %v368
    %v377 = vadd.f32 %v311, %v369
    %378 = vrot.lane.b32.xlu0 %v83, 16
    %v379 = vpop.permute.xlu0 %378
    %380 = vrot.lane.b32.xlu0 %v85, 16
    %v381 = vpop.permute.xlu0 %380
    %382 = vrot.lane.b32.xlu0 %v87, 16
    %v383 = vpop.permute.xlu0 %382
    %384 = vrot.lane.b32.xlu0 %v89, 16
    %v385 = vpop.permute.xlu0 %384
    %390 = vrot.lane.b32.xlu0 %v82, 16
    %v391 = vpop.permute.xlu0 %390
    %392 = vrot.lane.b32.xlu0 %v84, 16
    %v393 = vpop.permute.xlu0 %392
    %394 = vrot.lane.b32.xlu0 %v86, 16
    %v395 = vpop.permute.xlu0 %394
    %396 = vrot.lane.b32.xlu0 %v88, 16
    %v397 = vpop.permute.xlu0 %396
    %v398 = vsel %vm238, %v391, %v379
    %v399 = vsel %vm238, %v393, %v381
    %v400 = vsel %vm238, %v395, %v383
    %v401 = vsel %vm238, %v397, %v385
    %v410 = vsel %vm238, %v379, %v391
    %v411 = vsel %vm238, %v381, %v393
    %v412 = vsel %vm238, %v383, %v395
    %v413 = vsel %vm238, %v385, %v397
    %s414 = scalar_lea.vmem [#allocation5], 3
    %v415 = vld [vmem:[%s414] ss:$8 sm:$0x3]
    %v417 = vlaneseq
    %v418 = vshrl.u32 %v417, 7
    %v419 = vsub.s32 0, %v418
    %v420 = vrot.slane %v415, %v419
    %v421 = vlaneseq
    %v422 = vshrl.u32 %v421, 7
    %v423 = vsub.s32 1, %v422
    %v424 = vrot.slane %v415, %v423
    %v427 = vmul.f32 %v410, %v420
    %v428 = vmul.f32 %v398, %v424
    %v429 = vmul.f32 %v411, %v420
    %v430 = vmul.f32 %v399, %v424
    %v431 = vmul.f32 %v412, %v420
    %v432 = vmul.f32 %v400, %v424
    %v433 = vmul.f32 %v413, %v420
    %v434 = vmul.f32 %v401, %v424
    %v435 = vadd.f32 %v370, %v427
    %v436 = vadd.f32 %v371, %v428
    %v437 = vadd.f32 %v372, %v429
    %v438 = vadd.f32 %v373, %v430
    %v439 = vadd.f32 %v374, %v431
    %v440 = vadd.f32 %v375, %v432
    %v441 = vadd.f32 %v376, %v433
    %v442 = vadd.f32 %v377, %v434
    %s443 = scalar_lea.vmem [#allocation5], 4
    %v444 = vld [vmem:[%s443] ss:$8 sm:$0x3]
    %v446 = vlaneseq
    %v447 = vshrl.u32 %v446, 7
    %v448 = vsub.s32 0, %v447
    %v449 = vrot.slane %v444, %v448
    %v450 = vlaneseq
    %v451 = vshrl.u32 %v450, 7
    %v452 = vsub.s32 1, %v451
    %v453 = vrot.slane %v444, %v452
    %v456 = vmul.f32 %v82, %v449
    %v457 = vmul.f32 %v83, %v453
    %v458 = vmul.f32 %v84, %v449
    %v459 = vmul.f32 %v85, %v453
    %v460 = vmul.f32 %v86, %v449
    %v461 = vmul.f32 %v87, %v453
    %v462 = vmul.f32 %v88, %v449
    %v463 = vmul.f32 %v89, %v453
    %v464 = vadd.f32 %v435, %v456
    %v465 = vadd.f32 %v436, %v457
    %v466 = vadd.f32 %v437, %v458
    %v467 = vadd.f32 %v438, %v459
    %v468 = vadd.f32 %v439, %v460
    %v469 = vadd.f32 %v440, %v461
    %v470 = vadd.f32 %v441, %v462
    %v471 = vadd.f32 %v442, %v463
    %472 = vrot.lane.b32.xlu0 %v82, 112
    %v473 = vpop.permute.xlu0 %472
    %474 = vrot.lane.b32.xlu0 %v83, 112
    %v475 = vpop.permute.xlu0 %474
    %476 = vrot.lane.b32.xlu0 %v84, 112
    %v477 = vpop.permute.xlu0 %476
    %478 = vrot.lane.b32.xlu0 %v85, 112
    %v479 = vpop.permute.xlu0 %478
    %480 = vrot.lane.b32.xlu0 %v86, 112
    %v481 = vpop.permute.xlu0 %480
    %482 = vrot.lane.b32.xlu0 %v87, 112
    %v483 = vpop.permute.xlu0 %482
    %484 = vrot.lane.b32.xlu0 %v88, 112
    %v485 = vpop.permute.xlu0 %484
    %486 = vrot.lane.b32.xlu0 %v89, 112
    %v487 = vpop.permute.xlu0 %486
    %v488 = vsel %vm328, %v473, %v475
    %v489 = vsel %vm328, %v477, %v479
    %v490 = vsel %vm328, %v481, %v483
    %v491 = vsel %vm328, %v485, %v487
    %v504 = vsel %vm328, %v475, %v473
    %v505 = vsel %vm328, %v479, %v477
    %v506 = vsel %vm328, %v483, %v481
    %v507 = vsel %vm328, %v487, %v485
    %s508 = scalar_lea.vmem [#allocation5], 5
    %v509 = vld [vmem:[%s508] ss:$8 sm:$0x3]
    %v511 = vlaneseq
    %v512 = vshrl.u32 %v511, 7
    %v513 = vsub.s32 0, %v512
    %v514 = vrot.slane %v509, %v513
    %v515 = vlaneseq
    %v516 = vshrl.u32 %v515, 7
    %v517 = vsub.s32 1, %v516
    %v518 = vrot.slane %v509, %v517
    %v521 = vmul.f32 %v488, %v514
    %v522 = vmul.f32 %v504, %v518
    %v523 = vmul.f32 %v489, %v514
    %v524 = vmul.f32 %v505, %v518
    %v525 = vmul.f32 %v490, %v514
    %v526 = vmul.f32 %v506, %v518
    %v527 = vmul.f32 %v491, %v514
    %v528 = vmul.f32 %v507, %v518
    %v529 = vadd.f32 %v464, %v521
    %v530 = vadd.f32 %v465, %v522
    %v531 = vadd.f32 %v466, %v523
    %v532 = vadd.f32 %v467, %v524
    %v533 = vadd.f32 %v468, %v525
    %v534 = vadd.f32 %v469, %v526
    %v535 = vadd.f32 %v470, %v527
    %v536 = vadd.f32 %v471, %v528
    %vm537 = vcmask 1046528
    %v538 = vrot.slane %v82, 1
    %v539 = vrot.slane %v84, 1
    %v540 = vsel %vm537, %v538, %v539
    %v541 = vrot.slane %v83, 1
    %v542 = vrot.slane %v85, 1
    %v543 = vsel %vm537, %v541, %v542
    %v544 = vrot.slane %v86, 1
    %v545 = vsel %vm537, %v539, %v544
    %v546 = vrot.slane %v87, 1
    %v547 = vsel %vm537, %v542, %v546
    %v548 = vrot.slane %v88, 1
    %v549 = vsel %vm537, %v544, %v548
    %v550 = vrot.slane %v89, 1
    %v551 = vsel %vm537, %v546, %v550
    %v562 = vsel %vm537, %v548, %v538
    %v563 = vsel %vm537, %v550, %v541
    %v564 = vadd.s32 %v139, 1
    %v565 = vadd.s32 %v140, 1
    %v566 = vadd.s32 %v141, 1
    %v567 = vadd.s32 %v142, 1
    %vm568 = vcmp.ge.s32.totalorder %v564, 0
    %vm569 = vcmp.ge.s32.totalorder %v565, 0
    %vm570 = vcmp.ge.s32.totalorder %v566, 0
    %vm571 = vcmp.ge.s32.totalorder %v567, 0
    %vm572 = vcmp.lt.s32.totalorder %v564, 16
    %vm573 = vcmp.lt.s32.totalorder %v565, 16
    %vm574 = vcmp.lt.s32.totalorder %v566, 16
    %vm575 = vcmp.lt.s32.totalorder %v567, 16
    %vm576 = vmand %vm568, %vm572
    %vm577 = vmand %vm569, %vm573
    %vm578 = vmand %vm570, %vm574
    %vm579 = vmand %vm571, %vm575
    %v580 = vsel %vm576, 1, 0
    %v581 = vsel %vm577, 1, 0
    %v582 = vsel %vm578, 1, 0
    %v583 = vsel %vm579, 1, 0
    %vm584 = vcmp.eq.s32.totalorder %v580, 1
    %vm585 = vcmp.eq.s32.totalorder %v581, 1
    %vm586 = vcmp.eq.s32.totalorder %v582, 1
    %vm587 = vcmp.eq.s32.totalorder %v583, 1
    %v588 = vsel %vm584, %v540, 0.0
    %v589 = vsel %vm584, %v543, 0.0
    %v590 = vsel %vm585, %v545, 0.0
    %v591 = vsel %vm585, %v547, 0.0
    %v592 = vsel %vm586, %v549, 0.0
    %v593 = vsel %vm586, %v551, 0.0
    %v594 = vsel %vm587, %v562, 0.0
    %v595 = vsel %vm587, %v563, 0.0
    %600 = vrot.lane.b32.xlu0 %v589, 16
    %v601 = vpop.permute.xlu0 %600
    %602 = vrot.lane.b32.xlu0 %v591, 16
    %v603 = vpop.permute.xlu0 %602
    %604 = vrot.lane.b32.xlu0 %v593, 16
    %v605 = vpop.permute.xlu0 %604
    %606 = vrot.lane.b32.xlu0 %v595, 16
    %v607 = vpop.permute.xlu0 %606
    %616 = vrot.lane.b32.xlu0 %v588, 16
    %v617 = vpop.permute.xlu0 %616
    %618 = vrot.lane.b32.xlu0 %v590, 16
    %v619 = vpop.permute.xlu0 %618
    %620 = vrot.lane.b32.xlu0 %v592, 16
    %v621 = vpop.permute.xlu0 %620
    %622 = vrot.lane.b32.xlu0 %v594, 16
    %v623 = vpop.permute.xlu0 %622
    %v624 = vsel %vm238, %v617, %v601
    %v625 = vsel %vm238, %v619, %v603
    %v626 = vsel %vm238, %v621, %v605
    %v627 = vsel %vm238, %v623, %v607
    %v636 = vsel %vm238, %v601, %v617
    %v637 = vsel %vm238, %v603, %v619
    %v638 = vsel %vm238, %v605, %v621
    %v639 = vsel %vm238, %v607, %v623
    %s640 = scalar_lea.vmem [#allocation5], 6
    %v641 = vld [vmem:[%s640] ss:$8 sm:$0x3]
    %v643 = vlaneseq
    %v644 = vshrl.u32 %v643, 7
    %v645 = vsub.s32 0, %v644
    %v646 = vrot.slane %v641, %v645
    %v647 = vlaneseq
    %v648 = vshrl.u32 %v647, 7
    %v649 = vsub.s32 1, %v648
    %v650 = vrot.slane %v641, %v649
    %v653 = vmul.f32 %v636, %v646
    %v654 = vmul.f32 %v624, %v650
    %v655 = vmul.f32 %v637, %v646
    %v656 = vmul.f32 %v625, %v650
    %v657 = vmul.f32 %v638, %v646
    %v658 = vmul.f32 %v626, %v650
    %v659 = vmul.f32 %v639, %v646
    %v660 = vmul.f32 %v627, %v650
    %v661 = vadd.f32 %v529, %v653
    %v662 = vadd.f32 %v530, %v654
    %v663 = vadd.f32 %v531, %v655
    %v664 = vadd.f32 %v532, %v656
    %v665 = vadd.f32 %v533, %v657
    %v666 = vadd.f32 %v534, %v658
    %v667 = vadd.f32 %v535, %v659
    %v668 = vadd.f32 %v536, %v660
    %s669 = scalar_lea.vmem [#allocation5], 7
    %v670 = vld [vmem:[%s669] ss:$8 sm:$0x3]
    %v672 = vlaneseq
    %v673 = vshrl.u32 %v672, 7
    %v674 = vsub.s32 0, %v673
    %v675 = vrot.slane %v670, %v674
    %v676 = vlaneseq
    %v677 = vshrl.u32 %v676, 7
    %v678 = vsub.s32 1, %v677
    %v679 = vrot.slane %v670, %v678
    %v682 = vmul.f32 %v588, %v675
    %v683 = vmul.f32 %v589, %v679
    %v684 = vmul.f32 %v590, %v675
    %v685 = vmul.f32 %v591, %v679
    %v686 = vmul.f32 %v592, %v675
    %v687 = vmul.f32 %v593, %v679
    %v688 = vmul.f32 %v594, %v675
    %v689 = vmul.f32 %v595, %v679
    %v690 = vadd.f32 %v661, %v682
    %v691 = vadd.f32 %v662, %v683
    %v692 = vadd.f32 %v663, %v684
    %v693 = vadd.f32 %v664, %v685
    %v694 = vadd.f32 %v665, %v686
    %v695 = vadd.f32 %v666, %v687
    %v696 = vadd.f32 %v667, %v688
    %v697 = vadd.f32 %v668, %v689
    %698 = vrot.lane.b32.xlu0 %v588, 112
    %v699 = vpop.permute.xlu0 %698
    %700 = vrot.lane.b32.xlu0 %v589, 112
    %v701 = vpop.permute.xlu0 %700
    %702 = vrot.lane.b32.xlu0 %v590, 112
    %v703 = vpop.permute.xlu0 %702
    %704 = vrot.lane.b32.xlu0 %v591, 112
    %v705 = vpop.permute.xlu0 %704
    %706 = vrot.lane.b32.xlu0 %v592, 112
    %v707 = vpop.permute.xlu0 %706
    %708 = vrot.lane.b32.xlu0 %v593, 112
    %v709 = vpop.permute.xlu0 %708
    %710 = vrot.lane.b32.xlu0 %v594, 112
    %v711 = vpop.permute.xlu0 %710
    %712 = vrot.lane.b32.xlu0 %v595, 112
    %v713 = vpop.permute.xlu0 %712
    %v714 = vsel %vm328, %v699, %v701
    %v715 = vsel %vm328, %v703, %v705
    %v716 = vsel %vm328, %v707, %v709
    %v717 = vsel %vm328, %v711, %v713
    %v730 = vsel %vm328, %v701, %v699
    %v731 = vsel %vm328, %v705, %v703
    %v732 = vsel %vm328, %v709, %v707
    %v733 = vsel %vm328, %v713, %v711
    %s734 = scalar_lea.vmem [#allocation5], 16
    %v735 = vld [vmem:[%s734] ss:$8 sm:$0x3]
    %v737 = vlaneseq
    %v738 = vshrl.u32 %v737, 7
    %v739 = vsub.s32 0, %v738
    %v740 = vrot.slane %v735, %v739
    %v741 = vlaneseq
    %v742 = vshrl.u32 %v741, 7
    %v743 = vsub.s32 1, %v742
    %v744 = vrot.slane %v735, %v743
    %v747 = vmul.f32 %v714, %v740
    %v748 = vmul.f32 %v730, %v744
    %v749 = vmul.f32 %v715, %v740
    %v750 = vmul.f32 %v731, %v744
    %v751 = vmul.f32 %v716, %v740
    %v752 = vmul.f32 %v732, %v744
    %v753 = vmul.f32 %v717, %v740
    %v754 = vmul.f32 %v733, %v744
    %v755 = vadd.f32 %v690, %v747
    %v756 = vadd.f32 %v691, %v748
    %v757 = vadd.f32 %v692, %v749
    %v758 = vadd.f32 %v693, %v750
    %v759 = vadd.f32 %v694, %v751
    %v760 = vadd.f32 %v695, %v752
    %v761 = vadd.f32 %v696, %v753
    %v762 = vadd.f32 %v697, %v754
    %v763 = vadd.f32 %v755, %v757
    %v764 = vadd.f32 %v763, %v759
    %v765 = vadd.f32 %v764, %v761
    %v766 = vrot.slane %v765, 4
    %v767 = vadd.f32 %v765, %v766
    %v768 = vrot.slane %v767, 2
    %v769 = vadd.f32 %v767, %v768
    %v770 = vrot.slane %v769, 1
    %v771 = vadd.f32 %v769, %v770
    %v772 = vadd.f32 %v756, %v758
    %v773 = vadd.f32 %v772, %v760
    %v774 = vadd.f32 %v773, %v762
    %v775 = vrot.slane %v774, 4
    %v776 = vadd.f32 %v774, %v775
    %v777 = vrot.slane %v776, 2
    %v778 = vadd.f32 %v776, %v777
    %v779 = vrot.slane %v778, 1
    %v780 = vadd.f32 %v778, %v779
    %v781 = vmul.f32 %v755, %v755
    %v782 = vmul.f32 %v756, %v756
    %v783 = vmul.f32 %v757, %v757
    %v784 = vmul.f32 %v758, %v758
    %v785 = vmul.f32 %v759, %v759
    %v786 = vmul.f32 %v760, %v760
    %v787 = vmul.f32 %v761, %v761
    %v788 = vmul.f32 %v762, %v762
    %v789 = vadd.f32 %v781, %v783
    %v790 = vadd.f32 %v789, %v785
    %v791 = vadd.f32 %v790, %v787
    %v792 = vrot.slane %v791, 4
    %v793 = vadd.f32 %v791, %v792
    %v794 = vrot.slane %v793, 2
    %v795 = vadd.f32 %v793, %v794
    %v796 = vrot.slane %v795, 1
    %v797 = vadd.f32 %v795, %v796
    %v798 = vadd.f32 %v782, %v784
    %v799 = vadd.f32 %v798, %v786
    %v800 = vadd.f32 %v799, %v788
    %v801 = vrot.slane %v800, 4
    %v802 = vadd.f32 %v800, %v801
    %v803 = vrot.slane %v802, 2
    %v804 = vadd.f32 %v802, %v803
    %v805 = vrot.slane %v804, 1
    %v806 = vadd.f32 %v804, %v805
    %808 = vrot.lane.b32.xlu0 %v771, 112
    %v809 = vpop.permute.xlu0 %808
    %v811 = vadd.f32 %v771, %v809
    %813 = vrot.lane.b32.xlu0 %v797, 112
    %v814 = vpop.permute.xlu0 %813
    %v816 = vadd.f32 %v797, %v814
    %817 = vrot.lane.b32.xlu0 %v771, 96
    %v818 = vpop.permute.xlu0 %817
    %v820 = vadd.f32 %v811, %v818
    %821 = vrot.lane.b32.xlu0 %v797, 96
    %v822 = vpop.permute.xlu0 %821
    %v824 = vadd.f32 %v816, %v822
    %825 = vrot.lane.b32.xlu0 %v771, 80
    %v826 = vpop.permute.xlu0 %825
    %v828 = vadd.f32 %v820, %v826
    %829 = vrot.lane.b32.xlu0 %v797, 80
    %v830 = vpop.permute.xlu0 %829
    %v832 = vadd.f32 %v824, %v830
    %833 = vrot.lane.b32.xlu0 %v771, 64
    %v834 = vpop.permute.xlu0 %833
    %v836 = vadd.f32 %v828, %v834
    %837 = vrot.lane.b32.xlu0 %v797, 64
    %v838 = vpop.permute.xlu0 %837
    %v840 = vadd.f32 %v832, %v838
    %841 = vrot.lane.b32.xlu0 %v771, 48
    %v842 = vpop.permute.xlu0 %841
    %v844 = vadd.f32 %v836, %v842
    %845 = vrot.lane.b32.xlu0 %v797, 48
    %v846 = vpop.permute.xlu0 %845
    %v848 = vadd.f32 %v840, %v846
    %849 = vrot.lane.b32.xlu0 %v771, 32
    %v850 = vpop.permute.xlu0 %849
    %v852 = vadd.f32 %v844, %v850
    %853 = vrot.lane.b32.xlu0 %v797, 32
    %v854 = vpop.permute.xlu0 %853
    %v856 = vadd.f32 %v848, %v854
    %857 = vrot.lane.b32.xlu0 %v771, 16
    %v858 = vpop.permute.xlu0 %857
    %v860 = vadd.f32 %v852, %v858
    %861 = vrot.lane.b32.xlu0 %v797, 16
    %v862 = vpop.permute.xlu0 %861
    %v864 = vadd.f32 %v856, %v862
    %v865 = vadd.f32 %v860, %v780
    %v866 = vadd.f32 %v864, %v806
    %868 = vrot.lane.b32.xlu0 %v780, 112
    %v869 = vpop.permute.xlu0 %868
    %v871 = vadd.f32 %v865, %v869
    %873 = vrot.lane.b32.xlu0 %v806, 112
    %v874 = vpop.permute.xlu0 %873
    %v876 = vadd.f32 %v866, %v874
    %877 = vrot.lane.b32.xlu0 %v780, 96
    %v878 = vpop.permute.xlu0 %877
    %v880 = vadd.f32 %v871, %v878
    %881 = vrot.lane.b32.xlu0 %v806, 96
    %v882 = vpop.permute.xlu0 %881
    %v884 = vadd.f32 %v876, %v882
    %885 = vrot.lane.b32.xlu0 %v780, 80
    %v886 = vpop.permute.xlu0 %885
    %v888 = vadd.f32 %v880, %v886
    %889 = vrot.lane.b32.xlu0 %v806, 80
    %v890 = vpop.permute.xlu0 %889
    %v892 = vadd.f32 %v884, %v890
    %893 = vrot.lane.b32.xlu0 %v780, 64
    %v894 = vpop.permute.xlu0 %893
    %v896 = vadd.f32 %v888, %v894
    %897 = vrot.lane.b32.xlu0 %v806, 64
    %v898 = vpop.permute.xlu0 %897
    %v900 = vadd.f32 %v892, %v898
    %901 = vrot.lane.b32.xlu0 %v780, 48
    %v902 = vpop.permute.xlu0 %901
    %v904 = vadd.f32 %v896, %v902
    %905 = vrot.lane.b32.xlu0 %v806, 48
    %v906 = vpop.permute.xlu0 %905
    %v908 = vadd.f32 %v900, %v906
    %909 = vrot.lane.b32.xlu0 %v780, 32
    %v910 = vpop.permute.xlu0 %909
    %v912 = vadd.f32 %v904, %v910
    %913 = vrot.lane.b32.xlu0 %v806, 32
    %v914 = vpop.permute.xlu0 %913
    %v916 = vadd.f32 %v908, %v914
    %917 = vrot.lane.b32.xlu0 %v780, 16
    %v918 = vpop.permute.xlu0 %917
    %v920 = vadd.f32 %v912, %v918
    %921 = vrot.lane.b32.xlu0 %v806, 16
    %v922 = vpop.permute.xlu0 %921
    %v924 = vadd.f32 %v916, %v922
    %v925 = vmul.f32 %v920, 0.001953125
    %v926 = vmul.f32 %v924, 0.001953125
    %v927 = vmul.f32 %v925, %v925
    %v928 = vsub.f32 %v926, %v927
    %v929 = vmax.f32 %v928, 0.0
    %v930 = vld [vmem:[%s2] sm:$0x1]
    %v931 = vadd.f32 %v929, 1e-05
    %v932 = vrsqrt.pop %v931
    %v933 = vmul.f32 %v930, %v932
    %v934 = vld [vmem:[%s2 + $0x1] sm:$0x1]
    %v935 = vmul.f32 %v925, %v933
    %v936 = vsub.f32 %v934, %v935
    %938 = vrot.lane.b32.xlu0 %v933, 16
    %v939 = vpop.permute.xlu0 %938
    %941 = vrot.lane.b32.xlu0 %v933, 32
    %v942 = vpop.permute.xlu0 %941
    %944 = vrot.lane.b32.xlu0 %v933, 48
    %v945 = vpop.permute.xlu0 %944
    %947 = vrot.lane.b32.xlu0 %v933, 64
    %v948 = vpop.permute.xlu0 %947
    %950 = vrot.lane.b32.xlu0 %v933, 80
    %v951 = vpop.permute.xlu0 %950
    %953 = vrot.lane.b32.xlu0 %v933, 96
    %v954 = vpop.permute.xlu0 %953
    %956 = vrot.lane.b32.xlu0 %v933, 112
    %v957 = vpop.permute.xlu0 %956
    %v959 = vsel %vm238, %v933, %v939
    %vm960 = vcmask 261120
    %v961 = vsel %vm960, %v959, %v942
    %vm962 = vcmask 392192
    %v963 = vsel %vm962, %v961, %v945
    %vm964 = vcmask 523264
    %v965 = vsel %vm964, %v963, %v948
    %vm966 = vcmask 654336
    %v967 = vsel %vm966, %v965, %v951
    %vm968 = vcmask 785408
    %v969 = vsel %vm968, %v967, %v954
    %v970 = vsel %vm328, %v969, %v957
    %972 = vrot.lane.b32.xlu0 %v936, 16
    %v973 = vpop.permute.xlu0 %972
    %975 = vrot.lane.b32.xlu0 %v936, 32
    %v976 = vpop.permute.xlu0 %975
    %978 = vrot.lane.b32.xlu0 %v936, 48
    %v979 = vpop.permute.xlu0 %978
    %981 = vrot.lane.b32.xlu0 %v936, 64
    %v982 = vpop.permute.xlu0 %981
    %984 = vrot.lane.b32.xlu0 %v936, 80
    %v985 = vpop.permute.xlu0 %984
    %987 = vrot.lane.b32.xlu0 %v936, 96
    %v988 = vpop.permute.xlu0 %987
    %990 = vrot.lane.b32.xlu0 %v936, 112
    %v991 = vpop.permute.xlu0 %990
    %v993 = vsel %vm238, %v936, %v973
    %v994 = vsel %vm960, %v993, %v976
    %v995 = vsel %vm962, %v994, %v979
    %v996 = vsel %vm964, %v995, %v982
    %v997 = vsel %vm966, %v996, %v985
    %v998 = vsel %vm968, %v997, %v988
    %v999 = vsel %vm328, %v998, %v991
    %v1000 = vld [vmem:[#allocation7] sm:$0xff]
    %v1001 = vld [vmem:[#allocation7 + $0x8] sm:$0xff]
    %v1002 = vld [vmem:[#allocation7 + $0x10] sm:$0xff]
    %v1003 = vld [vmem:[#allocation7 + $0x18] sm:$0xff]
    %v1004 = vld [vmem:[#allocation7 + $0x20] sm:$0xff]
    %v1005 = vld [vmem:[#allocation7 + $0x28] sm:$0xff]
    %v1006 = vld [vmem:[#allocation7 + $0x30] sm:$0xff]
    %v1007 = vld [vmem:[#allocation7 + $0x38] sm:$0xff]
    %v1008 = vld [vmem:[#allocation7 + $0x40] sm:$0xff]
    %v1009 = vld [vmem:[#allocation7 + $0x48] sm:$0xff]
    %v1010 = vld [vmem:[#allocation7 + $0x50] sm:$0xff]
    %v1011 = vld [vmem:[#allocation7 + $0x58] sm:$0xff]
    %v1012 = vld [vmem:[#allocation7 + $0x60] sm:$0xff]
    %v1013 = vld [vmem:[#allocation7 + $0x68] sm:$0xff]
    %v1014 = vld [vmem:[#allocation7 + $0x70] sm:$0xff]
    %v1015 = vld [vmem:[#allocation7 + $0x78] sm:$0xff]
    %v1016 = vld [vmem:[#allocation7 + $0x80] sm:$0xff]
    %v1017 = vld [vmem:[#allocation7 + $0x88] sm:$0xff]
    %v1018 = vld [vmem:[#allocation7 + $0x90] sm:$0xff]
    %v1019 = vld [vmem:[#allocation7 + $0x98] sm:$0xff]
    %v1020 = vld [vmem:[#allocation7 + $0xa0] sm:$0xff]
    %v1021 = vld [vmem:[#allocation7 + $0xa8] sm:$0xff]
    %v1022 = vld [vmem:[#allocation7 + $0xb0] sm:$0xff]
    %v1023 = vld [vmem:[#allocation7 + $0xb8] sm:$0xff]
    %v1024 = vld [vmem:[#allocation7 + $0xc0] sm:$0xff]
    %v1025 = vld [vmem:[#allocation7 + $0xc8] sm:$0xff]
    %v1026 = vld [vmem:[#allocation7 + $0xd0] sm:$0xff]
    %v1027 = vld [vmem:[#allocation7 + $0xd8] sm:$0xff]
    %v1028 = vld [vmem:[#allocation7 + $0xe0] sm:$0xff]
    %v1029 = vld [vmem:[#allocation7 + $0xe8] sm:$0xff]
    %v1030 = vld [vmem:[#allocation7 + $0xf0] sm:$0xff]
    %v1031 = vld [vmem:[#allocation7 + $0xf8] sm:$0xff]
    %v1032 = vld [vmem:[#allocation7 + $0x100] sm:$0xff]
    %v1033 = vld [vmem:[#allocation7 + $0x108] sm:$0xff]
    %v1034 = vld [vmem:[#allocation7 + $0x110] sm:$0xff]
    %v1035 = vld [vmem:[#allocation7 + $0x118] sm:$0xff]
    %v1036 = vld [vmem:[#allocation7 + $0x120] sm:$0xff]
    %v1037 = vld [vmem:[#allocation7 + $0x128] sm:$0xff]
    %v1038 = vld [vmem:[#allocation7 + $0x130] sm:$0xff]
    %v1039 = vld [vmem:[#allocation7 + $0x138] sm:$0xff]
    %v1040 = vld [vmem:[#allocation7 + $0x140] sm:$0xff]
    %v1041 = vld [vmem:[#allocation7 + $0x148] sm:$0xff]
    %v1042 = vld [vmem:[#allocation7 + $0x150] sm:$0xff]
    %v1043 = vld [vmem:[#allocation7 + $0x158] sm:$0xff]
    %v1044 = vld [vmem:[#allocation7 + $0x160] sm:$0xff]
    %v1045 = vld [vmem:[#allocation7 + $0x168] sm:$0xff]
    %v1046 = vld [vmem:[#allocation7 + $0x170] sm:$0xff]
    %v1047 = vld [vmem:[#allocation7 + $0x178] sm:$0xff]
    %v1048 = vld [vmem:[#allocation7 + $0x180] sm:$0xff]
    %v1049 = vld [vmem:[#allocation7 + $0x188] sm:$0xff]
    %v1050 = vld [vmem:[#allocation7 + $0x190] sm:$0xff]
    %v1051 = vld [vmem:[#allocation7 + $0x198] sm:$0xff]
    %v1052 = vld [vmem:[#allocation7 + $0x1a0] sm:$0xff]
    %v1053 = vld [vmem:[#allocation7 + $0x1a8] sm:$0xff]
    %v1054 = vld [vmem:[#allocation7 + $0x1b0] sm:$0xff]
    %v1055 = vld [vmem:[#allocation7 + $0x1b8] sm:$0xff]
    %v1056 = vld [vmem:[#allocation7 + $0x1c0] sm:$0xff]
    %v1057 = vld [vmem:[#allocation7 + $0x1c8] sm:$0xff]
    %v1058 = vld [vmem:[#allocation7 + $0x1d0] sm:$0xff]
    %v1059 = vld [vmem:[#allocation7 + $0x1d8] sm:$0xff]
    %v1060 = vld [vmem:[#allocation7 + $0x1e0] sm:$0xff]
    %v1061 = vld [vmem:[#allocation7 + $0x1e8] sm:$0xff]
    %v1062 = vld [vmem:[#allocation7 + $0x1f0] sm:$0xff]
    %v1063 = vld [vmem:[#allocation7 + $0x1f8] sm:$0xff]
    %v1064 = vpack.c.bf16 %v999, %v999
    %v1065 = vld [vmem:[%s4] sm:$0xf]
    %v1130 = vunpack.c.l.b16 %v1000
    %v1131 = vunpack.c.h.b16 %v1000
    %v1132 = vunpack.c.l.b16 %v1001
    %v1133 = vunpack.c.h.b16 %v1001
    %v1134 = vunpack.c.l.b16 %v1002
    %v1135 = vunpack.c.h.b16 %v1002
    %v1136 = vunpack.c.l.b16 %v1003
    %v1137 = vunpack.c.h.b16 %v1003
    %v1138 = vunpack.c.l.b16 %v1004
    %v1139 = vunpack.c.h.b16 %v1004
    %v1140 = vunpack.c.l.b16 %v1005
    %v1141 = vunpack.c.h.b16 %v1005
    %v1142 = vunpack.c.l.b16 %v1006
    %v1143 = vunpack.c.h.b16 %v1006
    %v1144 = vunpack.c.l.b16 %v1007
    %v1145 = vunpack.c.h.b16 %v1007
    %v1146 = vunpack.c.l.b16 %v1008
    %v1147 = vunpack.c.h.b16 %v1008
    %v1148 = vunpack.c.l.b16 %v1009
    %v1149 = vunpack.c.h.b16 %v1009
    %v1150 = vunpack.c.l.b16 %v1010
    %v1151 = vunpack.c.h.b16 %v1010
    %v1152 = vunpack.c.l.b16 %v1011
    %v1153 = vunpack.c.h.b16 %v1011
    %v1154 = vunpack.c.l.b16 %v1012
    %v1155 = vunpack.c.h.b16 %v1012
    %v1156 = vunpack.c.l.b16 %v1013
    %v1157 = vunpack.c.h.b16 %v1013
    %v1158 = vunpack.c.l.b16 %v1014
    %v1159 = vunpack.c.h.b16 %v1014
    %v1160 = vunpack.c.l.b16 %v1015
    %v1161 = vunpack.c.h.b16 %v1015
    %v1162 = vunpack.c.l.b16 %v1016
    %v1163 = vunpack.c.h.b16 %v1016
    %v1164 = vunpack.c.l.b16 %v1017
    %v1165 = vunpack.c.h.b16 %v1017
    %v1166 = vunpack.c.l.b16 %v1018
    %v1167 = vunpack.c.h.b16 %v1018
    %v1168 = vunpack.c.l.b16 %v1019
    %v1169 = vunpack.c.h.b16 %v1019
    %v1170 = vunpack.c.l.b16 %v1020
    %v1171 = vunpack.c.h.b16 %v1020
    %v1172 = vunpack.c.l.b16 %v1021
    %v1173 = vunpack.c.h.b16 %v1021
    %v1174 = vunpack.c.l.b16 %v1022
    %v1175 = vunpack.c.h.b16 %v1022
    %v1176 = vunpack.c.l.b16 %v1023
    %v1177 = vunpack.c.h.b16 %v1023
    %v1178 = vunpack.c.l.b16 %v1024
    %v1179 = vunpack.c.h.b16 %v1024
    %v1180 = vunpack.c.l.b16 %v1025
    %v1181 = vunpack.c.h.b16 %v1025
    %v1182 = vunpack.c.l.b16 %v1026
    %v1183 = vunpack.c.h.b16 %v1026
    %v1184 = vunpack.c.l.b16 %v1027
    %v1185 = vunpack.c.h.b16 %v1027
    %v1186 = vunpack.c.l.b16 %v1028
    %v1187 = vunpack.c.h.b16 %v1028
    %v1188 = vunpack.c.l.b16 %v1029
    %v1189 = vunpack.c.h.b16 %v1029
    %v1190 = vunpack.c.l.b16 %v1030
    %v1191 = vunpack.c.h.b16 %v1030
    %v1192 = vunpack.c.l.b16 %v1031
    %v1193 = vunpack.c.h.b16 %v1031
    %v1194 = vunpack.c.l.b16 %v1032
    %v1195 = vunpack.c.h.b16 %v1032
    %v1196 = vunpack.c.l.b16 %v1033
    %v1197 = vunpack.c.h.b16 %v1033
    %v1198 = vunpack.c.l.b16 %v1034
    %v1199 = vunpack.c.h.b16 %v1034
    %v1200 = vunpack.c.l.b16 %v1035
    %v1201 = vunpack.c.h.b16 %v1035
    %v1202 = vunpack.c.l.b16 %v1036
    %v1203 = vunpack.c.h.b16 %v1036
    %v1204 = vunpack.c.l.b16 %v1037
    %v1205 = vunpack.c.h.b16 %v1037
    %v1206 = vunpack.c.l.b16 %v1038
    %v1207 = vunpack.c.h.b16 %v1038
    %v1208 = vunpack.c.l.b16 %v1039
    %v1209 = vunpack.c.h.b16 %v1039
    %v1210 = vunpack.c.l.b16 %v1040
    %v1211 = vunpack.c.h.b16 %v1040
    %v1212 = vunpack.c.l.b16 %v1041
    %v1213 = vunpack.c.h.b16 %v1041
    %v1214 = vunpack.c.l.b16 %v1042
    %v1215 = vunpack.c.h.b16 %v1042
    %v1216 = vunpack.c.l.b16 %v1043
    %v1217 = vunpack.c.h.b16 %v1043
    %v1218 = vunpack.c.l.b16 %v1044
    %v1219 = vunpack.c.h.b16 %v1044
    %v1220 = vunpack.c.l.b16 %v1045
    %v1221 = vunpack.c.h.b16 %v1045
    %v1222 = vunpack.c.l.b16 %v1046
    %v1223 = vunpack.c.h.b16 %v1046
    %v1224 = vunpack.c.l.b16 %v1047
    %v1225 = vunpack.c.h.b16 %v1047
    %v1226 = vunpack.c.l.b16 %v1048
    %v1227 = vunpack.c.h.b16 %v1048
    %v1228 = vunpack.c.l.b16 %v1049
    %v1229 = vunpack.c.h.b16 %v1049
    %v1230 = vunpack.c.l.b16 %v1050
    %v1231 = vunpack.c.h.b16 %v1050
    %v1232 = vunpack.c.l.b16 %v1051
    %v1233 = vunpack.c.h.b16 %v1051
    %v1234 = vunpack.c.l.b16 %v1052
    %v1235 = vunpack.c.h.b16 %v1052
    %v1236 = vunpack.c.l.b16 %v1053
    %v1237 = vunpack.c.h.b16 %v1053
    %v1238 = vunpack.c.l.b16 %v1054
    %v1239 = vunpack.c.h.b16 %v1054
    %v1240 = vunpack.c.l.b16 %v1055
    %v1241 = vunpack.c.h.b16 %v1055
    %v1242 = vunpack.c.l.b16 %v1056
    %v1243 = vunpack.c.h.b16 %v1056
    %v1244 = vunpack.c.l.b16 %v1057
    %v1245 = vunpack.c.h.b16 %v1057
    %v1246 = vunpack.c.l.b16 %v1058
    %v1247 = vunpack.c.h.b16 %v1058
    %v1248 = vunpack.c.l.b16 %v1059
    %v1249 = vunpack.c.h.b16 %v1059
    %v1250 = vunpack.c.l.b16 %v1060
    %v1251 = vunpack.c.h.b16 %v1060
    %v1252 = vunpack.c.l.b16 %v1061
    %v1253 = vunpack.c.h.b16 %v1061
    %v1254 = vunpack.c.l.b16 %v1062
    %v1255 = vunpack.c.h.b16 %v1062
    %v1256 = vunpack.c.l.b16 %v1063
    %v1257 = vunpack.c.h.b16 %v1063
    %v1258 = vpack.c.b16 %v1134, %v1130
    %v1259 = vpack.c.b16 %v1135, %v1131
    %v1260 = vpack.c.b16 %v1136, %v1132
    %v1261 = vpack.c.b16 %v1137, %v1133
    %v1262 = vpack.c.b16 %v1142, %v1138
    %v1263 = vpack.c.b16 %v1143, %v1139
    %v1264 = vpack.c.b16 %v1144, %v1140
    %v1265 = vpack.c.b16 %v1145, %v1141
    %v1266 = vpack.c.b16 %v1150, %v1146
    %v1267 = vpack.c.b16 %v1151, %v1147
    %v1268 = vpack.c.b16 %v1152, %v1148
    %v1269 = vpack.c.b16 %v1153, %v1149
    %v1270 = vpack.c.b16 %v1158, %v1154
    %v1271 = vpack.c.b16 %v1159, %v1155
    %v1272 = vpack.c.b16 %v1160, %v1156
    %v1273 = vpack.c.b16 %v1161, %v1157
    %v1274 = vpack.c.b16 %v1166, %v1162
    %v1275 = vpack.c.b16 %v1167, %v1163
    %v1276 = vpack.c.b16 %v1168, %v1164
    %v1277 = vpack.c.b16 %v1169, %v1165
    %v1278 = vpack.c.b16 %v1174, %v1170
    %v1279 = vpack.c.b16 %v1175, %v1171
    %v1280 = vpack.c.b16 %v1176, %v1172
    %v1281 = vpack.c.b16 %v1177, %v1173
    %v1282 = vpack.c.b16 %v1182, %v1178
    %v1283 = vpack.c.b16 %v1183, %v1179
    %v1284 = vpack.c.b16 %v1184, %v1180
    %v1285 = vpack.c.b16 %v1185, %v1181
    %v1286 = vpack.c.b16 %v1190, %v1186
    %v1287 = vpack.c.b16 %v1191, %v1187
    %v1288 = vpack.c.b16 %v1192, %v1188
    %v1289 = vpack.c.b16 %v1193, %v1189
    %v1290 = vpack.c.b16 %v1198, %v1194
    %v1291 = vpack.c.b16 %v1199, %v1195
    %v1292 = vpack.c.b16 %v1200, %v1196
    %v1293 = vpack.c.b16 %v1201, %v1197
    %v1294 = vpack.c.b16 %v1206, %v1202
    %v1295 = vpack.c.b16 %v1207, %v1203
    %v1296 = vpack.c.b16 %v1208, %v1204
    %v1297 = vpack.c.b16 %v1209, %v1205
    %v1298 = vpack.c.b16 %v1214, %v1210
    %v1299 = vpack.c.b16 %v1215, %v1211
    %v1300 = vpack.c.b16 %v1216, %v1212
    %v1301 = vpack.c.b16 %v1217, %v1213
    %v1302 = vpack.c.b16 %v1222, %v1218
    %v1303 = vpack.c.b16 %v1223, %v1219
    %v1304 = vpack.c.b16 %v1224, %v1220
    %v1305 = vpack.c.b16 %v1225, %v1221
    %v1306 = vpack.c.b16 %v1230, %v1226
    %v1307 = vpack.c.b16 %v1231, %v1227
    %v1308 = vpack.c.b16 %v1232, %v1228
    %v1309 = vpack.c.b16 %v1233, %v1229
    %v1310 = vpack.c.b16 %v1238, %v1234
    %v1311 = vpack.c.b16 %v1239, %v1235
    %v1312 = vpack.c.b16 %v1240, %v1236
    %v1313 = vpack.c.b16 %v1241, %v1237
    %v1314 = vpack.c.b16 %v1246, %v1242
    %v1315 = vpack.c.b16 %v1247, %v1243
    %v1316 = vpack.c.b16 %v1248, %v1244
    %v1317 = vpack.c.b16 %v1249, %v1245
    %v1318 = vpack.c.b16 %v1254, %v1250
    %v1319 = vpack.c.b16 %v1255, %v1251
    %v1320 = vpack.c.b16 %v1256, %v1252
    %v1321 = vpack.c.b16 %v1257, %v1253
    %v1387 = vlaneseq
    %v1388 = vshrl.u32 %v1387, 7
    %v1389 = vsub.s32 0, %v1388
    %v1390 = vrot.slane %v1065, %v1389
    %v1391 = vlaneseq
    %v1392 = vshrl.u32 %v1391, 7
    %v1393 = vsub.s32 1, %v1392
    %v1394 = vrot.slane %v1065, %v1393
    %v1395 = vlaneseq
    %v1396 = vshrl.u32 %v1395, 7
    %v1397 = vsub.s32 2, %v1396
    %v1398 = vrot.slane %v1065, %v1397
    %v1399 = vlaneseq
    %v1400 = vshrl.u32 %v1399, 7
    %v1401 = vsub.s32 3, %v1400
    %v1402 = vrot.slane %v1065, %v1401
    %1407 = vmatprep.subr.bf16.mxu0 %v1259
    %1408 = vmatpush1.bf16.msra.mxu0 %v1258
    %1409 = vmatprep.subr.bf16.mxu0 %v1263
    %1410 = vmatpush1.bf16.msra.mxu0 %v1262
    %1411 = vmatprep.subr.bf16.mxu0 %v1267
    %1412 = vmatpush1.bf16.msra.mxu0 %v1266
    %1413 = vmatprep.subr.bf16.mxu0 %v1271
    %1414 = vmatpush1.bf16.msra.mxu0 %v1270
    %1415 = vmatprep.subr.bf16.mxu0 %v1275
    %1416 = vmatpush1.bf16.msra.mxu0 %v1274
    %1417 = vmatprep.subr.bf16.mxu0 %v1279
    %1418 = vmatpush1.bf16.msra.mxu0 %v1278
    %1419 = vmatprep.subr.bf16.mxu0 %v1283
    %1420 = vmatpush1.bf16.msra.mxu0 %v1282
    %1421 = vmatprep.subr.bf16.mxu0 %v1287
    %1422 = vmatpush1.bf16.msra.mxu0 %v1286
    %1423 = vmatprep.subr.bf16.mxu0 %v1291
    %1424 = vmatpush1.bf16.msra.mxu0 %v1290
    %1425 = vmatprep.subr.bf16.mxu0 %v1295
    %1426 = vmatpush1.bf16.msra.mxu0 %v1294
    %1427 = vmatprep.subr.bf16.mxu0 %v1299
    %1428 = vmatpush1.bf16.msra.mxu0 %v1298
    %1429 = vmatprep.subr.bf16.mxu0 %v1303
    %1430 = vmatpush1.bf16.msra.mxu0 %v1302
    %1431 = vmatprep.subr.bf16.mxu0 %v1307
    %1432 = vmatpush1.bf16.msra.mxu0 %v1306
    %1433 = vmatprep.subr.bf16.mxu0 %v1311
    %1434 = vmatpush1.bf16.msra.mxu0 %v1310
    %1435 = vmatprep.subr.bf16.mxu0 %v1315
    %1436 = vmatpush1.bf16.msra.mxu0 %v1314
    %1437 = vmatprep.subr.bf16.mxu0 %v1319
    %1438 = vmatpush1.bf16.msra.mxu0 %v1318
    %1439 = vmatprep.mubr.bf16.mxu0 %v1064
    %1440 = vmatmul.mubr.bf16.gmra.mrb[0].mxu0 %v1064
    %v1441 = vpop.f32.mrb[0].mxu0
    %v1442 = vadd.f32 %v1390, %v1441
    %v1443 = vpop.f32.mrb[0].mxu0
    %v1444 = vadd.f32 %v1394, %v1443
    %v1445 = vpop.f32.mrb[0].mxu0
    %v1446 = vpop.f32.mrb[0].mxu0
    %1447 = vdwg.mxu0
    %1448 = vmatprep.subr.bf16.mxu0 %v1261
    %1449 = vmatpush1.bf16.msra.mxu0 %v1260
    %1450 = vmatprep.subr.bf16.mxu0 %v1265
    %1451 = vmatpush1.bf16.msra.mxu0 %v1264
    %1452 = vmatprep.subr.bf16.mxu0 %v1269
    %1453 = vmatpush1.bf16.msra.mxu0 %v1268
    %1454 = vmatprep.subr.bf16.mxu0 %v1273
    %1455 = vmatpush1.bf16.msra.mxu0 %v1272
    %1456 = vmatprep.subr.bf16.mxu0 %v1277
    %1457 = vmatpush1.bf16.msra.mxu0 %v1276
    %1458 = vmatprep.subr.bf16.mxu0 %v1281
    %1459 = vmatpush1.bf16.msra.mxu0 %v1280
    %1460 = vmatprep.subr.bf16.mxu0 %v1285
    %1461 = vmatpush1.bf16.msra.mxu0 %v1284
    %1462 = vmatprep.subr.bf16.mxu0 %v1289
    %1463 = vmatpush1.bf16.msra.mxu0 %v1288
    %1464 = vmatprep.subr.bf16.mxu0 %v1293
    %1465 = vmatpush1.bf16.msra.mxu0 %v1292
    %1466 = vmatprep.subr.bf16.mxu0 %v1297
    %1467 = vmatpush1.bf16.msra.mxu0 %v1296
    %1468 = vmatprep.subr.bf16.mxu0 %v1301
    %1469 = vmatpush1.bf16.msra.mxu0 %v1300
    %1470 = vmatprep.subr.bf16.mxu0 %v1305
    %1471 = vmatpush1.bf16.msra.mxu0 %v1304
    %1472 = vmatprep.subr.bf16.mxu0 %v1309
    %1473 = vmatpush1.bf16.msra.mxu0 %v1308
    %1474 = vmatprep.subr.bf16.mxu0 %v1313
    %1475 = vmatpush1.bf16.msra.mxu0 %v1312
    %1476 = vmatprep.subr.bf16.mxu0 %v1317
    %1477 = vmatpush1.bf16.msra.mxu0 %v1316
    %1478 = vmatprep.subr.bf16.mxu0 %v1321
    %1479 = vmatpush1.bf16.msra.mxu0 %v1320
    %1480 = vmatprep.mubr.bf16.mxu0 %v1064
    %1481 = vmatmul.mubr.bf16.gmra.mrb[0].mxu0 %v1064
    %v1482 = vpop.f32.mrb[0].mxu0
    %v1483 = vadd.f32 %v1398, %v1482
    %v1484 = vpop.f32.mrb[0].mxu0
    %v1485 = vadd.f32 %v1402, %v1484
    %v1486 = vpop.f32.mrb[0].mxu0
    %v1487 = vpop.f32.mrb[0].mxu0
    %1488 = vdwg.mxu0
    %v1489 = vlaneseq
    %v1490 = vshrl.u32 %v1489, 7
    %v1491 = vsub.s32 0, %v1490
    %v1492 = vrot.slane %v970, %v1491
    %v1493 = vmul.f32 %v755, %v1492
    %v1494 = vmul.f32 %v756, %v1492
    %v1495 = vmul.f32 %v757, %v1492
    %v1496 = vmul.f32 %v758, %v1492
    %v1497 = vmul.f32 %v759, %v1492
    %v1498 = vmul.f32 %v760, %v1492
    %v1499 = vmul.f32 %v761, %v1492
    %v1500 = vmul.f32 %v762, %v1492
    %v1501 = vpack.c.bf16 %v1495, %v1493
    %v1502 = vpack.c.bf16 %v1496, %v1494
    %v1503 = vpack.c.bf16 %v1499, %v1497
    %v1504 = vpack.c.bf16 %v1500, %v1498
    %v1505 = vlaneseq
    %v1506 = vshrl.u32 %v1505, 7
    %v1507 = vsub.s32 0, %v1506
    %v1508 = vrot.slane %v1442, %v1507
    %v1509 = vlaneseq
    %v1510 = vshrl.u32 %v1509, 7
    %v1511 = vsub.s32 0, %v1510
    %v1512 = vrot.slane %v1444, %v1511
    %v1513 = vlaneseq
    %v1514 = vshrl.u32 %v1513, 7
    %v1515 = vsub.s32 0, %v1514
    %v1516 = vrot.slane %v1483, %v1515
    %v1517 = vlaneseq
    %v1518 = vshrl.u32 %v1517, 7
    %v1519 = vsub.s32 0, %v1518
    %v1520 = vrot.slane %v1485, %v1519
    %1521 = vmatprep.subr.bf16.mxu0 %v1259
    %1522 = vmatpush1.bf16.msra.mxu0 %v1258
    %1523 = vmatprep.subr.bf16.mxu0 %v1263
    %1524 = vmatpush1.bf16.msra.mxu0 %v1262
    %1525 = vmatprep.subr.bf16.mxu0 %v1267
    %1526 = vmatpush1.bf16.msra.mxu0 %v1266
    %1527 = vmatprep.subr.bf16.mxu0 %v1271
    %1528 = vmatpush1.bf16.msra.mxu0 %v1270
    %1529 = vmatprep.subr.bf16.mxu0 %v1275
    %1530 = vmatpush1.bf16.msra.mxu0 %v1274
    %1531 = vmatprep.subr.bf16.mxu0 %v1279
    %1532 = vmatpush1.bf16.msra.mxu0 %v1278
    %1533 = vmatprep.subr.bf16.mxu0 %v1283
    %1534 = vmatpush1.bf16.msra.mxu0 %v1282
    %1535 = vmatprep.subr.bf16.mxu0 %v1287
    %1536 = vmatpush1.bf16.msra.mxu0 %v1286
    %1537 = vmatprep.subr.bf16.mxu0 %v1291
    %1538 = vmatpush1.bf16.msra.mxu0 %v1290
    %1539 = vmatprep.subr.bf16.mxu0 %v1295
    %1540 = vmatpush1.bf16.msra.mxu0 %v1294
    %1541 = vmatprep.subr.bf16.mxu0 %v1299
    %1542 = vmatpush1.bf16.msra.mxu0 %v1298
    %1543 = vmatprep.subr.bf16.mxu0 %v1303
    %1544 = vmatpush1.bf16.msra.mxu0 %v1302
    %1545 = vmatprep.subr.bf16.mxu0 %v1307
    %1546 = vmatpush1.bf16.msra.mxu0 %v1306
    %1547 = vmatprep.subr.bf16.mxu0 %v1311
    %1548 = vmatpush1.bf16.msra.mxu0 %v1310
    %1549 = vmatprep.subr.bf16.mxu0 %v1315
    %1550 = vmatpush1.bf16.msra.mxu0 %v1314
    %1551 = vmatprep.subr.bf16.mxu0 %v1319
    %1552 = vmatpush1.bf16.msra.mxu0 %v1318
    %1553 = vmatprep.mubr.bf16.mxu0 %v1502
    %1554 = vmatmul.mubr.bf16.gmra.mrb[0].mxu0 %v1501
    %v1555 = vpop.f32.mrb[0].mxu0
    %v1556 = vadd.f32 %v1508, %v1555
    %v1557 = vpop.f32.mrb[0].mxu0
    %v1558 = vadd.f32 %v1512, %v1557
    %v1559 = vpop.f32.mrb[0].mxu0
    %v1560 = vadd.f32 %v1508, %v1559
    %v1561 = vpop.f32.mrb[0].mxu0
    %v1562 = vadd.f32 %v1512, %v1561
    %1563 = vmatprep.mubr.bf16.mxu0 %v1504
    %1564 = vmatmul.mubr.bf16.gmra.mrb[0].mxu0 %v1503
    %v1565 = vpop.f32.mrb[0].mxu0
    %v1566 = vadd.f32 %v1508, %v1565
    %v1567 = vpop.f32.mrb[0].mxu0
    %v1568 = vadd.f32 %v1512, %v1567
    %v1569 = vpop.f32.mrb[0].mxu0
    %v1570 = vadd.f32 %v1508, %v1569
    %v1571 = vpop.f32.mrb[0].mxu0
    %v1572 = vadd.f32 %v1512, %v1571
    %1573 = vdwg.mxu0
    %1574 = vmatprep.subr.bf16.mxu0 %v1261
    %1575 = vmatpush1.bf16.msra.mxu0 %v1260
    %1576 = vmatprep.subr.bf16.mxu0 %v1265
    %1577 = vmatpush1.bf16.msra.mxu0 %v1264
    %1578 = vmatprep.subr.bf16.mxu0 %v1269
    %1579 = vmatpush1.bf16.msra.mxu0 %v1268
    %1580 = vmatprep.subr.bf16.mxu0 %v1273
    %1581 = vmatpush1.bf16.msra.mxu0 %v1272
    %1582 = vmatprep.subr.bf16.mxu0 %v1277
    %1583 = vmatpush1.bf16.msra.mxu0 %v1276
    %1584 = vmatprep.subr.bf16.mxu0 %v1281
    %1585 = vmatpush1.bf16.msra.mxu0 %v1280
    %1586 = vmatprep.subr.bf16.mxu0 %v1285
    %1587 = vmatpush1.bf16.msra.mxu0 %v1284
    %1588 = vmatprep.subr.bf16.mxu0 %v1289
    %1589 = vmatpush1.bf16.msra.mxu0 %v1288
    %1590 = vmatprep.subr.bf16.mxu0 %v1293
    %1591 = vmatpush1.bf16.msra.mxu0 %v1292
    %1592 = vmatprep.subr.bf16.mxu0 %v1297
    %1593 = vmatpush1.bf16.msra.mxu0 %v1296
    %1594 = vmatprep.subr.bf16.mxu0 %v1301
    %1595 = vmatpush1.bf16.msra.mxu0 %v1300
    %1596 = vmatprep.subr.bf16.mxu0 %v1305
    %1597 = vmatpush1.bf16.msra.mxu0 %v1304
    %1598 = vmatprep.subr.bf16.mxu0 %v1309
    %1599 = vmatpush1.bf16.msra.mxu0 %v1308
    %1600 = vmatprep.subr.bf16.mxu0 %v1313
    %1601 = vmatpush1.bf16.msra.mxu0 %v1312
    %1602 = vmatprep.subr.bf16.mxu0 %v1317
    %1603 = vmatpush1.bf16.msra.mxu0 %v1316
    %1604 = vmatprep.subr.bf16.mxu0 %v1321
    %1605 = vmatpush1.bf16.msra.mxu0 %v1320
    %1606 = vmatprep.mubr.bf16.mxu0 %v1502
    %1607 = vmatmul.mubr.bf16.gmra.mrb[0].mxu0 %v1501
    %v1608 = vpop.f32.mrb[0].mxu0
    %v1609 = vadd.f32 %v1516, %v1608
    %v1610 = vpop.f32.mrb[0].mxu0
    %v1611 = vadd.f32 %v1520, %v1610
    %v1612 = vpop.f32.mrb[0].mxu0
    %v1613 = vadd.f32 %v1516, %v1612
    %v1614 = vpop.f32.mrb[0].mxu0
    %v1615 = vadd.f32 %v1520, %v1614
    %1616 = vmatprep.mubr.bf16.mxu0 %v1504
    %1617 = vmatmul.mubr.bf16.gmra.mrb[0].mxu0 %v1503
    %v1618 = vpop.f32.mrb[0].mxu0
    %v1619 = vadd.f32 %v1516, %v1618
    %v1620 = vpop.f32.mrb[0].mxu0
    %v1621 = vadd.f32 %v1520, %v1620
    %v1622 = vpop.f32.mrb[0].mxu0
    %v1623 = vadd.f32 %v1516, %v1622
    %v1624 = vpop.f32.mrb[0].mxu0
    %v1625 = vadd.f32 %v1520, %v1624
    %1626 = vdwg.mxu0
    %v1627 = vmax.f32 %v1556, 0.0
    %v1628 = vmax.f32 %v1558, 0.0
    %v1629 = vmax.f32 %v1609, 0.0
    %v1630 = vmax.f32 %v1611, 0.0
    %v1631 = vmax.f32 %v1560, 0.0
    %v1632 = vmax.f32 %v1562, 0.0
    %v1633 = vmax.f32 %v1613, 0.0
    %v1634 = vmax.f32 %v1615, 0.0
    %v1635 = vmax.f32 %v1566, 0.0
    %v1636 = vmax.f32 %v1568, 0.0
    %v1637 = vmax.f32 %v1619, 0.0
    %v1638 = vmax.f32 %v1621, 0.0
    %v1639 = vmax.f32 %v1570, 0.0
    %v1640 = vmax.f32 %v1572, 0.0
    %v1641 = vmax.f32 %v1623, 0.0
    %v1642 = vmax.f32 %v1625, 0.0
    %v1643 = vpack.c.bf16 %v1631, %v1627
    %v1644 = vpack.c.bf16 %v1632, %v1628
    %v1645 = vpack.c.bf16 %v1633, %v1629
    %v1646 = vpack.c.bf16 %v1634, %v1630
    %v1647 = vpack.c.bf16 %v1639, %v1635
    %v1648 = vpack.c.bf16 %v1640, %v1636
    %v1649 = vpack.c.bf16 %v1641, %v1637
    %v1650 = vpack.c.bf16 %v1642, %v1638
    %v1651 = vld [vmem:[#allocation8] sm:$0xff]
    %v1652 = vld [vmem:[#allocation8 + $0x8] sm:$0xff]
    %v1653 = vld [vmem:[#allocation8 + $0x10] sm:$0xff]
    %v1654 = vld [vmem:[#allocation8 + $0x18] sm:$0xff]
    %v1655 = vld [vmem:[#allocation8 + $0x20] sm:$0xff]
    %v1656 = vld [vmem:[#allocation8 + $0x28] sm:$0xff]
    %v1657 = vld [vmem:[#allocation8 + $0x30] sm:$0xff]
    %v1658 = vld [vmem:[#allocation8 + $0x38] sm:$0xff]
    %v1659 = vld [vmem:[#allocation8 + $0x40] sm:$0xff]
    %v1660 = vld [vmem:[#allocation8 + $0x48] sm:$0xff]
    %v1661 = vld [vmem:[#allocation8 + $0x50] sm:$0xff]
    %v1662 = vld [vmem:[#allocation8 + $0x58] sm:$0xff]
    %v1663 = vld [vmem:[#allocation8 + $0x60] sm:$0xff]
    %v1664 = vld [vmem:[#allocation8 + $0x68] sm:$0xff]
    %v1665 = vld [vmem:[#allocation8 + $0x70] sm:$0xff]
    %v1666 = vld [vmem:[#allocation8 + $0x78] sm:$0xff]
    %v1667 = vld [vmem:[#allocation8 + $0x80] sm:$0xff]
    %v1668 = vld [vmem:[#allocation8 + $0x88] sm:$0xff]
    %v1669 = vld [vmem:[#allocation8 + $0x90] sm:$0xff]
    %v1670 = vld [vmem:[#allocation8 + $0x98] sm:$0xff]
    %v1671 = vld [vmem:[#allocation8 + $0xa0] sm:$0xff]
    %v1672 = vld [vmem:[#allocation8 + $0xa8] sm:$0xff]
    %v1673 = vld [vmem:[#allocation8 + $0xb0] sm:$0xff]
    %v1674 = vld [vmem:[#allocation8 + $0xb8] sm:$0xff]
    %v1675 = vld [vmem:[#allocation8 + $0xc0] sm:$0xff]
    %v1676 = vld [vmem:[#allocation8 + $0xc8] sm:$0xff]
    %v1677 = vld [vmem:[#allocation8 + $0xd0] sm:$0xff]
    %v1678 = vld [vmem:[#allocation8 + $0xd8] sm:$0xff]
    %v1679 = vld [vmem:[#allocation8 + $0xe0] sm:$0xff]
    %v1680 = vld [vmem:[#allocation8 + $0xe8] sm:$0xff]
    %v1681 = vld [vmem:[#allocation8 + $0xf0] sm:$0xff]
    %v1682 = vld [vmem:[#allocation8 + $0xf8] sm:$0xff]
    %v1683 = vld [vmem:[#allocation8 + $0x100] sm:$0xff]
    %v1684 = vld [vmem:[#allocation8 + $0x108] sm:$0xff]
    %v1685 = vld [vmem:[#allocation8 + $0x110] sm:$0xff]
    %v1686 = vld [vmem:[#allocation8 + $0x118] sm:$0xff]
    %v1687 = vld [vmem:[#allocation8 + $0x120] sm:$0xff]
    %v1688 = vld [vmem:[#allocation8 + $0x128] sm:$0xff]
    %v1689 = vld [vmem:[#allocation8 + $0x130] sm:$0xff]
    %v1690 = vld [vmem:[#allocation8 + $0x138] sm:$0xff]
    %v1691 = vld [vmem:[#allocation8 + $0x140] sm:$0xff]
    %v1692 = vld [vmem:[#allocation8 + $0x148] sm:$0xff]
    %v1693 = vld [vmem:[#allocation8 + $0x150] sm:$0xff]
    %v1694 = vld [vmem:[#allocation8 + $0x158] sm:$0xff]
    %v1695 = vld [vmem:[#allocation8 + $0x160] sm:$0xff]
    %v1696 = vld [vmem:[#allocation8 + $0x168] sm:$0xff]
    %v1697 = vld [vmem:[#allocation8 + $0x170] sm:$0xff]
    %v1698 = vld [vmem:[#allocation8 + $0x178] sm:$0xff]
    %v1699 = vld [vmem:[#allocation8 + $0x180] sm:$0xff]
    %v1700 = vld [vmem:[#allocation8 + $0x188] sm:$0xff]
    %v1701 = vld [vmem:[#allocation8 + $0x190] sm:$0xff]
    %v1702 = vld [vmem:[#allocation8 + $0x198] sm:$0xff]
    %v1703 = vld [vmem:[#allocation8 + $0x1a0] sm:$0xff]
    %v1704 = vld [vmem:[#allocation8 + $0x1a8] sm:$0xff]
    %v1705 = vld [vmem:[#allocation8 + $0x1b0] sm:$0xff]
    %v1706 = vld [vmem:[#allocation8 + $0x1b8] sm:$0xff]
    %v1707 = vld [vmem:[#allocation8 + $0x1c0] sm:$0xff]
    %v1708 = vld [vmem:[#allocation8 + $0x1c8] sm:$0xff]
    %v1709 = vld [vmem:[#allocation8 + $0x1d0] sm:$0xff]
    %v1710 = vld [vmem:[#allocation8 + $0x1d8] sm:$0xff]
    %v1711 = vld [vmem:[#allocation8 + $0x1e0] sm:$0xff]
    %v1712 = vld [vmem:[#allocation8 + $0x1e8] sm:$0xff]
    %v1713 = vld [vmem:[#allocation8 + $0x1f0] sm:$0xff]
    %v1714 = vld [vmem:[#allocation8 + $0x1f8] sm:$0xff]
    %v1715 = vld [vmem:[%s6] sm:$0x3]
    %v1717 = vlaneseq
    %v1718 = vshrl.u32 %v1717, 7
    %v1719 = vsub.s32 0, %v1718
    %v1720 = vrot.slane %v1715, %v1719
    %v1721 = vlaneseq
    %v1722 = vshrl.u32 %v1721, 7
    %v1723 = vsub.s32 1, %v1722
    %v1724 = vrot.slane %v1715, %v1723
    %v1791 = vunpack.c.l.b16 %v1651
    %v1792 = vunpack.c.h.b16 %v1651
    %v1793 = vunpack.c.l.b16 %v1652
    %v1794 = vunpack.c.h.b16 %v1652
    %v1795 = vunpack.c.l.b16 %v1653
    %v1796 = vunpack.c.h.b16 %v1653
    %v1797 = vunpack.c.l.b16 %v1654
    %v1798 = vunpack.c.h.b16 %v1654
    %v1799 = vunpack.c.l.b16 %v1655
    %v1800 = vunpack.c.h.b16 %v1655
    %v1801 = vunpack.c.l.b16 %v1656
    %v1802 = vunpack.c.h.b16 %v1656
    %v1803 = vunpack.c.l.b16 %v1657
    %v1804 = vunpack.c.h.b16 %v1657
    %v1805 = vunpack.c.l.b16 %v1658
    %v1806 = vunpack.c.h.b16 %v1658
    %v1807 = vunpack.c.l.b16 %v1659
    %v1808 = vunpack.c.h.b16 %v1659
    %v1809 = vunpack.c.l.b16 %v1660
    %v1810 = vunpack.c.h.b16 %v1660
    %v1811 = vunpack.c.l.b16 %v1661
    %v1812 = vunpack.c.h.b16 %v1661
    %v1813 = vunpack.c.l.b16 %v1662
    %v1814 = vunpack.c.h.b16 %v1662
    %v1815 = vunpack.c.l.b16 %v1663
    %v1816 = vunpack.c.h.b16 %v1663
    %v1817 = vunpack.c.l.b16 %v1664
    %v1818 = vunpack.c.h.b16 %v1664
    %v1819 = vunpack.c.l.b16 %v1665
    %v1820 = vunpack.c.h.b16 %v1665
    %v1821 = vunpack.c.l.b16 %v1666
    %v1822 = vunpack.c.h.b16 %v1666
    %v1823 = vunpack.c.l.b16 %v1667
    %v1824 = vunpack.c.h.b16 %v1667
    %v1825 = vunpack.c.l.b16 %v1668
    %v1826 = vunpack.c.h.b16 %v1668
    %v1827 = vunpack.c.l.b16 %v1669
    %v1828 = vunpack.c.h.b16 %v1669
    %v1829 = vunpack.c.l.b16 %v1670
    %v1830 = vunpack.c.h.b16 %v1670
    %v1831 = vunpack.c.l.b16 %v1671
    %v1832 = vunpack.c.h.b16 %v1671
    %v1833 = vunpack.c.l.b16 %v1672
    %v1834 = vunpack.c.h.b16 %v1672
    %v1835 = vunpack.c.l.b16 %v1673
    %v1836 = vunpack.c.h.b16 %v1673
    %v1837 = vunpack.c.l.b16 %v1674
    %v1838 = vunpack.c.h.b16 %v1674
    %v1839 = vunpack.c.l.b16 %v1675
    %v1840 = vunpack.c.h.b16 %v1675
    %v1841 = vunpack.c.l.b16 %v1676
    %v1842 = vunpack.c.h.b16 %v1676
    %v1843 = vunpack.c.l.b16 %v1677
    %v1844 = vunpack.c.h.b16 %v1677
    %v1845 = vunpack.c.l.b16 %v1678
    %v1846 = vunpack.c.h.b16 %v1678
    %v1847 = vunpack.c.l.b16 %v1679
    %v1848 = vunpack.c.h.b16 %v1679
    %v1849 = vunpack.c.l.b16 %v1680
    %v1850 = vunpack.c.h.b16 %v1680
    %v1851 = vunpack.c.l.b16 %v1681
    %v1852 = vunpack.c.h.b16 %v1681
    %v1853 = vunpack.c.l.b16 %v1682
    %v1854 = vunpack.c.h.b16 %v1682
    %v1855 = vunpack.c.l.b16 %v1683
    %v1856 = vunpack.c.h.b16 %v1683
    %v1857 = vunpack.c.l.b16 %v1684
    %v1858 = vunpack.c.h.b16 %v1684
    %v1859 = vunpack.c.l.b16 %v1685
    %v1860 = vunpack.c.h.b16 %v1685
    %v1861 = vunpack.c.l.b16 %v1686
    %v1862 = vunpack.c.h.b16 %v1686
    %v1863 = vunpack.c.l.b16 %v1687
    %v1864 = vunpack.c.h.b16 %v1687
    %v1865 = vunpack.c.l.b16 %v1688
    %v1866 = vunpack.c.h.b16 %v1688
    %v1867 = vunpack.c.l.b16 %v1689
    %v1868 = vunpack.c.h.b16 %v1689
    %v1869 = vunpack.c.l.b16 %v1690
    %v1870 = vunpack.c.h.b16 %v1690
    %v1871 = vunpack.c.l.b16 %v1691
    %v1872 = vunpack.c.h.b16 %v1691
    %v1873 = vunpack.c.l.b16 %v1692
    %v1874 = vunpack.c.h.b16 %v1692
    %v1875 = vunpack.c.l.b16 %v1693
    %v1876 = vunpack.c.h.b16 %v1693
    %v1877 = vunpack.c.l.b16 %v1694
    %v1878 = vunpack.c.h.b16 %v1694
    %v1879 = vunpack.c.l.b16 %v1695
    %v1880 = vunpack.c.h.b16 %v1695
    %v1881 = vunpack.c.l.b16 %v1696
    %v1882 = vunpack.c.h.b16 %v1696
    %v1883 = vunpack.c.l.b16 %v1697
    %v1884 = vunpack.c.h.b16 %v1697
    %v1885 = vunpack.c.l.b16 %v1698
    %v1886 = vunpack.c.h.b16 %v1698
    %v1887 = vunpack.c.l.b16 %v1699
    %v1888 = vunpack.c.h.b16 %v1699
    %v1889 = vunpack.c.l.b16 %v1700
    %v1890 = vunpack.c.h.b16 %v1700
    %v1891 = vunpack.c.l.b16 %v1701
    %v1892 = vunpack.c.h.b16 %v1701
    %v1893 = vunpack.c.l.b16 %v1702
    %v1894 = vunpack.c.h.b16 %v1702
    %v1895 = vunpack.c.l.b16 %v1703
    %v1896 = vunpack.c.h.b16 %v1703
    %v1897 = vunpack.c.l.b16 %v1704
    %v1898 = vunpack.c.h.b16 %v1704
    %v1899 = vunpack.c.l.b16 %v1705
    %v1900 = vunpack.c.h.b16 %v1705
    %v1901 = vunpack.c.l.b16 %v1706
    %v1902 = vunpack.c.h.b16 %v1706
    %v1903 = vunpack.c.l.b16 %v1707
    %v1904 = vunpack.c.h.b16 %v1707
    %v1905 = vunpack.c.l.b16 %v1708
    %v1906 = vunpack.c.h.b16 %v1708
    %v1907 = vunpack.c.l.b16 %v1709
    %v1908 = vunpack.c.h.b16 %v1709
    %v1909 = vunpack.c.l.b16 %v1710
    %v1910 = vunpack.c.h.b16 %v1710
    %v1911 = vunpack.c.l.b16 %v1711
    %v1912 = vunpack.c.h.b16 %v1711
    %v1913 = vunpack.c.l.b16 %v1712
    %v1914 = vunpack.c.h.b16 %v1712
    %v1915 = vunpack.c.l.b16 %v1713
    %v1916 = vunpack.c.h.b16 %v1713
    %v1917 = vunpack.c.l.b16 %v1714
    %v1918 = vunpack.c.h.b16 %v1714
    %v1919 = vpack.c.b16 %v1793, %v1791
    %v1920 = vpack.c.b16 %v1794, %v1792
    %v1921 = vpack.c.b16 %v1797, %v1795
    %v1922 = vpack.c.b16 %v1798, %v1796
    %v1923 = vpack.c.b16 %v1801, %v1799
    %v1924 = vpack.c.b16 %v1802, %v1800
    %v1925 = vpack.c.b16 %v1805, %v1803
    %v1926 = vpack.c.b16 %v1806, %v1804
    %v1927 = vpack.c.b16 %v1809, %v1807
    %v1928 = vpack.c.b16 %v1810, %v1808
    %v1929 = vpack.c.b16 %v1813, %v1811
    %v1930 = vpack.c.b16 %v1814, %v1812
    %v1931 = vpack.c.b16 %v1817, %v1815
    %v1932 = vpack.c.b16 %v1818, %v1816
    %v1933 = vpack.c.b16 %v1821, %v1819
    %v1934 = vpack.c.b16 %v1822, %v1820
    %v1935 = vpack.c.b16 %v1825, %v1823
    %v1936 = vpack.c.b16 %v1826, %v1824
    %v1937 = vpack.c.b16 %v1829, %v1827
    %v1938 = vpack.c.b16 %v1830, %v1828
    %v1939 = vpack.c.b16 %v1833, %v1831
    %v1940 = vpack.c.b16 %v1834, %v1832
    %v1941 = vpack.c.b16 %v1837, %v1835
    %v1942 = vpack.c.b16 %v1838, %v1836
    %v1943 = vpack.c.b16 %v1841, %v1839
    %v1944 = vpack.c.b16 %v1842, %v1840
    %v1945 = vpack.c.b16 %v1845, %v1843
    %v1946 = vpack.c.b16 %v1846, %v1844
    %v1947 = vpack.c.b16 %v1849, %v1847
    %v1948 = vpack.c.b16 %v1850, %v1848
    %v1949 = vpack.c.b16 %v1853, %v1851
    %v1950 = vpack.c.b16 %v1854, %v1852
    %v1951 = vpack.c.b16 %v1857, %v1855
    %v1952 = vpack.c.b16 %v1858, %v1856
    %v1953 = vpack.c.b16 %v1861, %v1859
    %v1954 = vpack.c.b16 %v1862, %v1860
    %v1955 = vpack.c.b16 %v1865, %v1863
    %v1956 = vpack.c.b16 %v1866, %v1864
    %v1957 = vpack.c.b16 %v1869, %v1867
    %v1958 = vpack.c.b16 %v1870, %v1868
    %v1959 = vpack.c.b16 %v1873, %v1871
    %v1960 = vpack.c.b16 %v1874, %v1872
    %v1961 = vpack.c.b16 %v1877, %v1875
    %v1962 = vpack.c.b16 %v1878, %v1876
    %v1963 = vpack.c.b16 %v1881, %v1879
    %v1964 = vpack.c.b16 %v1882, %v1880
    %v1965 = vpack.c.b16 %v1885, %v1883
    %v1966 = vpack.c.b16 %v1886, %v1884
    %v1967 = vpack.c.b16 %v1889, %v1887
    %v1968 = vpack.c.b16 %v1890, %v1888
    %v1969 = vpack.c.b16 %v1893, %v1891
    %v1970 = vpack.c.b16 %v1894, %v1892
    %v1971 = vpack.c.b16 %v1897, %v1895
    %v1972 = vpack.c.b16 %v1898, %v1896
    %v1973 = vpack.c.b16 %v1901, %v1899
    %v1974 = vpack.c.b16 %v1902, %v1900
    %v1975 = vpack.c.b16 %v1905, %v1903
    %v1976 = vpack.c.b16 %v1906, %v1904
    %v1977 = vpack.c.b16 %v1909, %v1907
    %v1978 = vpack.c.b16 %v1910, %v1908
    %v1979 = vpack.c.b16 %v1913, %v1911
    %v1980 = vpack.c.b16 %v1914, %v1912
    %v1981 = vpack.c.b16 %v1917, %v1915
    %v1982 = vpack.c.b16 %v1918, %v1916
    %2047 = vmatprep.subr.bf16.mxu0 %v1920
    %2048 = vmatpush1.bf16.msra.mxu0 %v1919
    %2049 = vmatprep.subr.bf16.mxu0 %v1922
    %2050 = vmatpush1.bf16.msra.mxu0 %v1921
    %2051 = vmatprep.subr.bf16.mxu0 %v1924
    %2052 = vmatpush1.bf16.msra.mxu0 %v1923
    %2053 = vmatprep.subr.bf16.mxu0 %v1926
    %2054 = vmatpush1.bf16.msra.mxu0 %v1925
    %2055 = vmatprep.subr.bf16.mxu0 %v1928
    %2056 = vmatpush1.bf16.msra.mxu0 %v1927
    %2057 = vmatprep.subr.bf16.mxu0 %v1930
    %2058 = vmatpush1.bf16.msra.mxu0 %v1929
    %2059 = vmatprep.subr.bf16.mxu0 %v1932
    %2060 = vmatpush1.bf16.msra.mxu0 %v1931
    %2061 = vmatprep.subr.bf16.mxu0 %v1934
    %2062 = vmatpush1.bf16.msra.mxu0 %v1933
    %2063 = vmatprep.subr.bf16.mxu0 %v1936
    %2064 = vmatpush1.bf16.msra.mxu0 %v1935
    %2065 = vmatprep.subr.bf16.mxu0 %v1938
    %2066 = vmatpush1.bf16.msra.mxu0 %v1937
    %2067 = vmatprep.subr.bf16.mxu0 %v1940
    %2068 = vmatpush1.bf16.msra.mxu0 %v1939
    %2069 = vmatprep.subr.bf16.mxu0 %v1942
    %2070 = vmatpush1.bf16.msra.mxu0 %v1941
    %2071 = vmatprep.subr.bf16.mxu0 %v1944
    %2072 = vmatpush1.bf16.msra.mxu0 %v1943
    %2073 = vmatprep.subr.bf16.mxu0 %v1946
    %2074 = vmatpush1.bf16.msra.mxu0 %v1945
    %2075 = vmatprep.subr.bf16.mxu0 %v1948
    %2076 = vmatpush1.bf16.msra.mxu0 %v1947
    %2077 = vmatprep.subr.bf16.mxu0 %v1950
    %2078 = vmatpush1.bf16.msra.mxu0 %v1949
    %2079 = vmatprep.mubr.bf16.mxu0 %v1644
    %2080 = vmatmul.mubr.bf16.gmra.mrb[0].mxu0 %v1643
    %v2081 = vpop.f32.mrb[0].mxu0
    %v2082 = vadd.f32 %v1720, %v2081
    %v2083 = vpop.f32.mrb[0].mxu0
    %v2084 = vadd.f32 %v1724, %v2083
    %v2085 = vpop.f32.mrb[0].mxu0
    %v2086 = vadd.f32 %v1720, %v2085
    %v2087 = vpop.f32.mrb[0].mxu0
    %v2088 = vadd.f32 %v1724, %v2087
    %2089 = vmatprep.mubr.bf16.mxu0 %v1648
    %2090 = vmatmul.mubr.bf16.gmra.mrb[0].mxu0 %v1647
    %v2091 = vpop.f32.mrb[0].mxu0
    %v2092 = vadd.f32 %v1720, %v2091
    %v2093 = vpop.f32.mrb[0].mxu0
    %v2094 = vadd.f32 %v1724, %v2093
    %v2095 = vpop.f32.mrb[0].mxu0
    %v2096 = vadd.f32 %v1720, %v2095
    %v2097 = vpop.f32.mrb[0].mxu0
    %v2098 = vadd.f32 %v1724, %v2097
    %2099 = vdwg.mxu0
    %2100 = vmatprep.subr.bf16.mxu0 %v1952
    %2101 = vmatpush1.bf16.msra.mxu0 %v1951
    %2102 = vmatprep.subr.bf16.mxu0 %v1954
    %2103 = vmatpush1.bf16.msra.mxu0 %v1953
    %2104 = vmatprep.subr.bf16.mxu0 %v1956
    %2105 = vmatpush1.bf16.msra.mxu0 %v1955
    %2106 = vmatprep.subr.bf16.mxu0 %v1958
    %2107 = vmatpush1.bf16.msra.mxu0 %v1957
    %2108 = vmatprep.subr.bf16.mxu0 %v1960
    %2109 = vmatpush1.bf16.msra.mxu0 %v1959
    %2110 = vmatprep.subr.bf16.mxu0 %v1962
    %2111 = vmatpush1.bf16.msra.mxu0 %v1961
    %2112 = vmatprep.subr.bf16.mxu0 %v1964
    %2113 = vmatpush1.bf16.msra.mxu0 %v1963
    %2114 = vmatprep.subr.bf16.mxu0 %v1966
    %2115 = vmatpush1.bf16.msra.mxu0 %v1965
    %2116 = vmatprep.subr.bf16.mxu0 %v1968
    %2117 = vmatpush1.bf16.msra.mxu0 %v1967
    %2118 = vmatprep.subr.bf16.mxu0 %v1970
    %2119 = vmatpush1.bf16.msra.mxu0 %v1969
    %2120 = vmatprep.subr.bf16.mxu0 %v1972
    %2121 = vmatpush1.bf16.msra.mxu0 %v1971
    %2122 = vmatprep.subr.bf16.mxu0 %v1974
    %2123 = vmatpush1.bf16.msra.mxu0 %v1973
    %2124 = vmatprep.subr.bf16.mxu0 %v1976
    %2125 = vmatpush1.bf16.msra.mxu0 %v1975
    %2126 = vmatprep.subr.bf16.mxu0 %v1978
    %2127 = vmatpush1.bf16.msra.mxu0 %v1977
    %2128 = vmatprep.subr.bf16.mxu0 %v1980
    %2129 = vmatpush1.bf16.msra.mxu0 %v1979
    %2130 = vmatprep.subr.bf16.mxu0 %v1982
    %2131 = vmatpush1.bf16.msra.mxu0 %v1981
    %2132 = vmatprep.mubr.bf16.mxu0 %v1646
    %2133 = vmatmul.mubr.bf16.gmra.mrb[0].mxu0 %v1645
    %v2134 = vpop.f32.mrb[0].mxu0
    %v2135 = vadd.f32 %v2082, %v2134
    %v2136 = vpop.f32.mrb[0].mxu0
    %v2137 = vadd.f32 %v2084, %v2136
    %v2138 = vpop.f32.mrb[0].mxu0
    %v2139 = vadd.f32 %v2086, %v2138
    %v2140 = vpop.f32.mrb[0].mxu0
    %v2141 = vadd.f32 %v2088, %v2140
    %2142 = vmatprep.mubr.bf16.mxu0 %v1650
    %2143 = vmatmul.mubr.bf16.gmra.mrb[0].mxu0 %v1649
    %v2144 = vpop.f32.mrb[0].mxu0
    %v2145 = vadd.f32 %v2092, %v2144
    %v2146 = vpop.f32.mrb[0].mxu0
    %v2147 = vadd.f32 %v2094, %v2146
    %v2148 = vpop.f32.mrb[0].mxu0
    %v2149 = vadd.f32 %v2096, %v2148
    %v2150 = vpop.f32.mrb[0].mxu0
    %v2151 = vadd.f32 %v2098, %v2150
    %2152 = vdwg.mxu0
    %v2153 = vadd.f32 %v82, %v2135
    %v2154 = vadd.f32 %v83, %v2137
    %v2155 = vadd.f32 %v84, %v2139
    %v2156 = vadd.f32 %v85, %v2141
    %v2157 = vadd.f32 %v86, %v2145
    %v2158 = vadd.f32 %v87, %v2147
    %v2159 = vadd.f32 %v88, %v2149
    %v2160 = vadd.f32 %v89, %v2151
    %2161 = vst [vmem:[#allocation10] sm:$0xff] %v2153
    %2162 = vst [vmem:[#allocation10 + $0x8] sm:$0xff] %v2154
    %2163 = vst [vmem:[#allocation10 + $0x10] sm:$0xff] %v2155
    %2164 = vst [vmem:[#allocation10 + $0x18] sm:$0xff] %v2156
    %2165 = vst [vmem:[#allocation10 + $0x20] sm:$0xff] %v2157
    %2166 = vst [vmem:[#allocation10 + $0x28] sm:$0xff] %v2158
    %2167 = vst [vmem:[#allocation10 + $0x30] sm:$0xff] %v2159
    %2168 = vst [vmem:[#allocation10 + $0x38] sm:$0xff] %v2160
    // Predicated region
    $region46: #{tpu_custom_call.1} parent=1 // pred_check
      _
    $region47: #{tpu_custom_call.1} parent=1 // pred_check_branch
      %2170 = sbr.rel (0) target = $region49
    $region48: #{tpu_custom_call.1} parent=1 // pred_region
      %s2172 = ssub.s32 1024, 1024
      %2173 = vsyncadd [#allocation4], %s2172
      %s2174 = sshll.u32 [#allocation10], 4
      %s2175 = int_to_ptr.vmem [resolvable:$true] %s2174
      %2180 = dma.vmem_to_hbm [thread:$0]  %s2175, 1024, %s7, [#allocation4], 256, 256, 16
    $region49: #{tpu_custom_call.1} parent=1 // pred_fallthru
      _
    // Predicated region
    $region50: #{tpu_custom_call.1} parent=1 // pred_check
      _
    $region51: #{tpu_custom_call.1} parent=1 // pred_check_branch
      %2182 = sbr.rel (0) target = $region53
    $region52: #{tpu_custom_call.1} parent=1 // pred_region
      %2183 = dma.done [#allocation4], 1024
    $region53: #{tpu_custom_call.1} parent=1 // pred_fallthru
      _
    %2184 = vsyncpa [#allocation3], 1
    %2185 = vsyncpa [#allocation6], 1
    %2186 = vsyncpa [#allocation9], 1
    %2187 = vsyncpa [#allocation4], 1

</llo_original>
